<compile_context>
chip_gen: v5e
topology: v5e:2x2
jax: 0.10.0
libtpu: 0.0.40
codegen_flags: <defaults>
</compile_context>

<pallas_src>
import jax
import jax.numpy as jnp
from jax import lax
from jax.experimental import pallas as pl
from jax.experimental.pallas import tpu as pltpu


def _vmem_capacity_bytes():
    try:
        return int(pltpu.get_tpu_info().vmem_capacity_bytes)
    except Exception:
        return 64 * 2**20          # conservative (v7x-sized) fallback


def _round_up(x, m):
    return -(-x // m) * m


def _choose_tiling(B, C, H, W, p, nh, in_itemsize, compute_norm):
    """Pick (Bt, rh, vmem_limit): Bt batch samples per grid step and rh patch
    rows per spatial step (rh == nh -> spatial axis untiled)."""
    Wp = _round_up(W, 128)
    cap = _vmem_capacity_bytes()
    budget = int(cap * 0.55)                       # working set, leave pipeline/regalloc headroom
    vmem_limit = min(int(cap * 0.85), 112 * 2**20)

    def per_sample(rows):
        rp = _round_up(rows, 8)
        # 2 inputs x 2 pipeline buffers (input dtype) + concurrent f32 (C,rows,W)
        # temporaries (x, y, diff [, centered target]) + a few (rows, W) f32 maps.
        n_cwh = 4 if compute_norm else 3
        return C * rp * Wp * (4 * in_itemsize + n_cwh * 4) + 8 * rp * Wp * 4

    if per_sample(H) <= budget:
        # Full-image spatial blocks; pack as many batch samples as fit.
        bt_max = max(1, budget // per_sample(H))
        Bt = max(d for d in range(1, B + 1) if B % d == 0 and d <= bt_max)
        if B >= 2 and Bt == B:
            # keep >= 2 grid steps so both v7x TensorCores get work (steps stay huge)
            Bt = max(d for d in range(1, B) if B % d == 0)
        rh = nh
    else:
        # One sample per step is already big; tile over whole patch-rows instead.
        Bt = 1
        rh = None
        for d in range(nh, 0, -1):
            if nh % d == 0 and (d == nh or (d * p) % 8 == 0) and per_sample(d * p) <= budget:
                rh = d
                break
        if rh is None:
            rh = nh if p % 8 else 1    # last resort; vmem_limit still guards
    return Bt, rh, vmem_limit


def _make_kernel(*, Bt, C, rh, p, W, nw, n, eps, compute_pix, compute_norm):
    """Kernel over one (batch-block, patch-row-block) grid point.

    refs: x (Bt,C,Ht,W), y (Bt,C,Ht,W), colpool (W,nw) [, colpoolT (nw,W)],
    then one (Bt, nh, nw) output block per enabled loss."""
    Ht = rh * p
    HIGH = lax.Precision.HIGHEST
    cdims = (((2,), (0,)), ((), ()))     # contract the last (lane) dim with rhs dim 0
    inv_n = 1.0 / n
    inv_nm1 = 1.0 / max(n - 1, 1)

    def kernel(*refs):
        refs = list(refs)
        x_ref, y_ref, colpool_ref = refs.pop(0), refs.pop(0), refs.pop(0)
        colpoolT_ref = refs.pop(0) if compute_norm else None
        out_refs = refs

        row_off = pl.multiple_of(pl.program_id(1) * rh, rh)

        x = x_ref[...].astype(jnp.float32)       # (Bt, C, Ht, W)
        y = y_ref[...].astype(jnp.float32)
        colpool = colpool_ref[...]               # (W, nw) 0/1, resident

        def pool(s):
            # (Bt, Ht, W) -> (Bt, rh, nw): exact f32 row-pool over p sublanes,
            # then a tiny column-pool matmul (HIGHEST is ~free at this size).
            s = jnp.sum(s.reshape(Bt, rh, p, W), axis=2)
            return lax.dot_general(s, colpool, cdims, precision=HIGH,
                                   preferred_element_type=jnp.float32)

        oi = 0
        if compute_pix:
            d = x - y
            ps = pool(jnp.sum(d * d, axis=1))
            out_refs[oi][:, pl.ds(row_off, rh), :] = ps
            oi += 1

        if compute_norm:
            colpoolT = colpoolT_ref[...]         # (nw, W) 0/1, resident

            def expand(q):
                # (Bt, rh, nw) -> (Bt, Ht, W): column-expand matmul + sublane broadcast.
                qw = lax.dot_general(q, colpoolT, cdims, precision=HIGH,
                                     preferred_element_type=jnp.float32)
                return jnp.broadcast_to(qw[:, :, None, :], (Bt, rh, p, W)).reshape(Bt, Ht, W)

            mean = pool(jnp.sum(y, axis=1)) * inv_n              # (Bt, rh, nw)
            yc = y - expand(mean)[:, None, :, :]                 # centered target
            var = pool(jnp.sum(yc * yc, axis=1)) * inv_nm1       # >= 0 by construction
            rstd = lax.rsqrt(var + eps)
            dn = x - yc * expand(rstd)[:, None, :, :]
            psn = pool(jnp.sum(dn * dn, axis=1))
            out_refs[oi][:, pl.ds(row_off, rh), :] = psn

    return kernel


def _patch_sq_sums(x, y, *, p, nh, nw, compute_pix, compute_norm, eps=1e-6,
                   _force_tiling=None):
    """Per-patch sums (over c, p1, p2) of squared error for the requested
    losses. Returns (ps_pix, ps_norm), each (B, nh, nw) float32 or None."""
    B, C, H, W = x.shape
    if _force_tiling is None:
        Bt, rh, vmem_limit = _choose_tiling(
            B, C, H, W, p, nh, jnp.dtype(x.dtype).itemsize, compute_norm)
    else:
        Bt, rh = _force_tiling
        vmem_limit = 64 * 2**20
    Ht = rh * p
    nb, nhs = B // Bt, nh // rh
    n = p * p * C

    # 0/1 column-pool matrix (W, nw): pixel column w belongs to patch column w // p.
    col = jnp.arange(W, dtype=jnp.int32) // p
    colpool = (col[:, None] == jnp.arange(nw, dtype=jnp.int32)[None, :]).astype(jnp.float32)

    inputs = [x, y, colpool]
    in_specs = [
        pl.BlockSpec((Bt, C, Ht, W), lambda b, h: (b, 0, h, 0)),
        pl.BlockSpec((Bt, C, Ht, W), lambda b, h: (b, 0, h, 0)),
        pl.BlockSpec((W, nw), lambda b, h: (0, 0)),          # resident across the grid
    ]
    if compute_norm:
        inputs.append(colpool.T)                             # (nw, W), resident
        in_specs.append(pl.BlockSpec((nw, W), lambda b, h: (0, 0)))

    n_out = int(compute_pix) + int(compute_norm)
    out_shape = tuple(jax.ShapeDtypeStruct((B, nh, nw), jnp.float32) for _ in range(n_out))
    out_specs = tuple(pl.BlockSpec((Bt, nh, nw), lambda b, h: (b, 0, 0)) for _ in range(n_out))

    kernel = _make_kernel(Bt=Bt, C=C, rh=rh, p=p, W=W, nw=nw, n=n, eps=eps,
                          compute_pix=compute_pix, compute_norm=compute_norm)

    outs = pl.pallas_call(
        kernel,
        out_shape=out_shape,
        grid=(nb, nhs),
        in_specs=in_specs,
        out_specs=out_specs,
        compiler_params=pltpu.CompilerParams(
            dimension_semantics=("parallel", "arbitrary"),
            vmem_limit_bytes=vmem_limit),
    )(*inputs)

    outs = list(outs)
    ps_pix = outs.pop(0) if compute_pix else None
    ps_norm = outs.pop(0) if compute_norm else None
    return ps_pix, ps_norm


class MaskedMSELoss:
    """JAX/Pallas port of the PyTorch MaskedMSELoss (no learnable parameters)."""

    def __init__(self, patch_size=16, stride=1, pix_loss=True, norm_pix_loss=False,
                 pix_loss_weight=1.0, norm_pix_loss_weight=1.0, ginfo=None):
        self.patch_size = patch_size
        self.stride = stride
        self.scale_factor = patch_size // stride
        self.pix_loss = pix_loss
        self.norm_pix_loss = norm_pix_loss
        self.pix_weight = pix_loss_weight
        self.norm_pix_weight = norm_pix_loss_weight
        assert pix_loss or norm_pix_loss

    def _loss_from_patch_sums(self, ps, mask, B, C, H, W):
        """ps: (B, nh, nw) per-patch sums of squared error over (c, p1, p2)."""
        p = self.scale_factor
        ps = ps.reshape(B, -1)
        if mask is None:
            return jnp.sum(ps) / (B * C * H * W)          # plain mean over all elements
        m = mask.reshape(B, -1).astype(jnp.float32)
        lsum = jnp.sum(ps * m, axis=-1) * (1.0 / C)       # sum_hw mask * mean_c(sq)
        msum = (p * p) * jnp.sum(m, axis=-1)              # analytic upsampled-mask sum
        valid = msum > 0
        per_sample = jnp.where(valid, lsum / jnp.where(valid, msum, 1.0), 0.0)
        n_valid = jnp.maximum(jnp.sum(valid.astype(jnp.float32)), 1.0)
        # torch: 0 if the whole mask is zero, else mean over samples with a valid mask
        return jnp.where(jnp.sum(m) > 0, jnp.sum(per_sample) / n_valid, 0.0)

    def __call__(self, input, target, mask=None, modality='', _force_tiling=None):
        B, C, H, W = input.shape
        p = self.scale_factor
        assert H % p == 0 and W % p == 0, "H, W must be divisible by patch_size//stride"
        nh, nw = H // p, W // p

        ps_pix, ps_norm = _patch_sq_sums(
            input, target, p=p, nh=nh, nw=nw,
            compute_pix=self.pix_loss, compute_norm=self.norm_pix_loss,
            _force_tiling=_force_tiling)

        # TODO(synk): the NaN pdb-breakpoint debugging hook from the PyTorch code is omitted.
        loss_dict = {}
        if self.pix_loss:
            loss_dict[f'loss_{modality}'] = (
                self._loss_from_patch_sums(ps_pix, mask, B, C, H, W) * self.pix_weight)
        if self.norm_pix_loss:
            loss_dict[f'loss_{modality}_norm'] = (
                self._loss_from_patch_sums(ps_norm, mask, B, C, H, W) * self.norm_pix_weight)
        return loss_dict


if __name__ == "__main__":
    key = jax.random.PRNGKey(0)
    B, C, H, W = 2, 4, 32, 32
    patch_size, stride = 16, 1
    p = patch_size // stride
    nh, nw = H // p, W // p

    k1, k2, k3 = jax.random.split(key, 3)
    x = jax.random.normal(k1, (B, C, H, W), jnp.float32)
    y = jax.random.normal(k2, (B, C, H, W), jnp.float32)
    mask = (jax.random.uniform(k3, (B, nh * nw)) > 0.5).astype(jnp.float32)
    mask = mask.at[0, 0].set(1.0)  # ensure at least one valid patch overall

    loss_fn = MaskedMSELoss(patch_size=patch_size, stride=stride,
                            pix_loss=True, norm_pix_loss=True)
    out = loss_fn(x, y, mask=mask, modality='rgb')
    loss_pix = jax.block_until_ready(out['loss_rgb'])
    loss_norm = jax.block_until_ready(out['loss_rgb_norm'])

    # ---- pure-JAX reference (mirrors the PyTorch semantics) ----
    def ref_masked(loss_el, msk):
        per_pix = jnp.mean(loss_el, axis=1)
        mu = jnp.repeat(jnp.repeat(msk.reshape(B, nh, nw), p, 1), p, 2)
        lsum = jnp.sum(per_pix * mu, axis=(1, 2))
        msum = jnp.sum(mu, axis=(1, 2))
        valid = msum > 0
        return jnp.mean(lsum[valid] / msum[valid])

    ref_pix = ref_masked((x - y) ** 2, mask)

    tr = y.reshape(B, C, nh, p, nw, p)
    t_mean = tr.mean(axis=(1, 3, 5), keepdims=True)
    t_var = tr.var(axis=(1, 3, 5), keepdims=True, ddof=1)
    yn = ((tr - t_mean) / jnp.sqrt(t_var + 1e-6)).reshape(B, C, H, W)
    ref_norm = ref_masked((x - yn) ** 2, mask)

    assert jnp.allclose(loss_pix, ref_pix, rtol=1e-4, atol=1e-7), (loss_pix, ref_pix)
    assert jnp.allclose(loss_norm, ref_norm, rtol=1e-3, atol=1e-6), (loss_norm, ref_norm)

    # mask=None path (plain mean)
    out_nm = loss_fn(x, y, mask=None, modality='rgb')
    ref_pix_nm = jnp.mean((x - y) ** 2)
    assert jnp.allclose(jax.block_until_ready(out_nm['loss_rgb']), ref_pix_nm,
                        rtol=1e-4, atol=1e-7)

    # exercise the spatial (patch-row) tiling fallback path explicitly
    out_ft = loss_fn(x, y, mask=mask, modality='rgb', _force_tiling=(1, 1))
    assert jnp.allclose(jax.block_until_ready(out_ft['loss_rgb']), ref_pix,
                        rtol=1e-4, atol=1e-7)
    assert jnp.allclose(jax.block_until_ready(out_ft['loss_rgb_norm']), ref_norm,
                        rtol=1e-3, atol=1e-6)

    print("KERNEL_OK")
</pallas_src>

<mosaic_0001>
module attributes {stable_mosaic.version = 11 : i64} {
  func.func @kernel(%arg0: i32, %arg1: i32, %arg2: memref<1x4x32x32xf32, #tpu.memory_space<vmem>>, %arg3: memref<1x4x32x32xf32, #tpu.memory_space<vmem>>, %arg4: memref<32x2xf32, #tpu.memory_space<vmem>>, %arg5: memref<2x32xf32, #tpu.memory_space<vmem>>, %arg6: memref<1x2x2xf32, #tpu.memory_space<vmem>>, %arg7: memref<1x2x2xf32, #tpu.memory_space<vmem>>) attributes {dimension_semantics = [#tpu.dimension_semantics<parallel>, #tpu.dimension_semantics<arbitrary>], iteration_bounds = array<i64: 2, 1>, scalar_prefetch = 0 : i64, scratch_operands = 0 : i64, tpu.core_type = #tpu.core_type<tc>, window_params = [{transform_indices = @transform_0, window_bounds = array<i64: 1, 4, 32, 32>}, {transform_indices = @transform_1, window_bounds = array<i64: 1, 4, 32, 32>}, {pipeline_mode = #tpu.pipeline_mode<synchronous>, transform_indices = @transform_2, window_bounds = array<i64: 32, 2>}, {pipeline_mode = #tpu.pipeline_mode<synchronous>, transform_indices = @transform_3, window_bounds = array<i64: 2, 32>}, {transform_indices = @transform_4, window_bounds = array<i64: 1, 2, 2>}, {transform_indices = @transform_5, window_bounds = array<i64: 1, 2, 2>}]} {
    %c2_i32 = arith.constant 2 : i32
    %0 = arith.muli %arg1, %c2_i32 : i32
    %1 = tpu.assume_multiple %0, 2 : i32
    %c0 = arith.constant 0 : index
    %c0_0 = arith.constant 0 : index
    %c0_1 = arith.constant 0 : index
    %c0_2 = arith.constant 0 : index
    %2 = vector.load %arg2[%c0, %c0_0, %c0_1, %c0_2] : memref<1x4x32x32xf32, #tpu.memory_space<vmem>>, vector<1x4x32x32xf32>
    %c0_3 = arith.constant 0 : index
    %c0_4 = arith.constant 0 : index
    %c0_5 = arith.constant 0 : index
    %c0_6 = arith.constant 0 : index
    %3 = vector.load %arg3[%c0_3, %c0_4, %c0_5, %c0_6] : memref<1x4x32x32xf32, #tpu.memory_space<vmem>>, vector<1x4x32x32xf32>
    %c0_7 = arith.constant 0 : index
    %c0_8 = arith.constant 0 : index
    %4 = vector.load %arg4[%c0_7, %c0_8] : memref<32x2xf32, #tpu.memory_space<vmem>>, vector<32x2xf32>
    %5 = arith.subf %2, %3 : vector<1x4x32x32xf32>
    %6 = arith.mulf %5, %5 : vector<1x4x32x32xf32>
    %cst = arith.constant dense<0.000000e+00> : vector<1x32x32xf32>
    %7 = vector.multi_reduction <add>, %6, %cst [1] : vector<1x4x32x32xf32> to vector<1x32x32xf32>
    %8 = vector.shape_cast %7 : vector<1x32x32xf32> to vector<1x2x16x32xf32>
    %cst_9 = arith.constant dense<0.000000e+00> : vector<1x2x32xf32>
    %9 = vector.multi_reduction <add>, %8, %cst_9 [2] : vector<1x2x16x32xf32> to vector<1x2x32xf32>
    %cst_10 = arith.constant dense<0.000000e+00> : vector<1x2x2xf32>
    %10 = tpu.matmul %9, %4, %cst_10 {dimension_numbers = #tpu.dot_dimension_numbers<[2], [0], [0, 1], [1], [0, 0, 0, 1, 1, 1], [], []>, precision = #tpu.contract_precision<fp32>} : vector<1x2x32xf32>, vector<32x2xf32>, vector<1x2x2xf32> -> vector<1x2x2xf32>
    %c0_11 = arith.constant 0 : index
    %11 = arith.index_cast %1 : i32 to index
    %c0_12 = arith.constant 0 : index
    %12 = vector.load %arg6[%c0_11, %11, %c0_12] : memref<1x2x2xf32, #tpu.memory_space<vmem>>, vector<1x2x2xf32>
    tpu.vector_store %arg6[%c0_11, %11, %c0_12], %10 {strides = array<i32>} : memref<1x2x2xf32, #tpu.memory_space<vmem>>, vector<1x2x2xf32>,
    %c0_13 = arith.constant 0 : index
    %c0_14 = arith.constant 0 : index
    %13 = vector.load %arg5[%c0_13, %c0_14] : memref<2x32xf32, #tpu.memory_space<vmem>>, vector<2x32xf32>
    %cst_15 = arith.constant dense<0.000000e+00> : vector<1x32x32xf32>
    %14 = vector.multi_reduction <add>, %3, %cst_15 [1] : vector<1x4x32x32xf32> to vector<1x32x32xf32>
    %15 = vector.shape_cast %14 : vector<1x32x32xf32> to vector<1x2x16x32xf32>
    %cst_16 = arith.constant dense<0.000000e+00> : vector<1x2x32xf32>
    %16 = vector.multi_reduction <add>, %15, %cst_16 [2] : vector<1x2x16x32xf32> to vector<1x2x32xf32>
    %cst_17 = arith.constant dense<0.000000e+00> : vector<1x2x2xf32>
    %17 = tpu.matmul %16, %4, %cst_17 {dimension_numbers = #tpu.dot_dimension_numbers<[2], [0], [0, 1], [1], [0, 0, 0, 1, 1, 1], [], []>, precision = #tpu.contract_precision<fp32>} : vector<1x2x32xf32>, vector<32x2xf32>, vector<1x2x2xf32> -> vector<1x2x2xf32>
    %cst_18 = arith.constant 9.765625E-4 : f32
    %18 = vector.broadcast %cst_18 : f32 to vector<1x2x2xf32>
    %19 = arith.mulf %17, %18 : vector<1x2x2xf32>
    %cst_19 = arith.constant dense<0.000000e+00> : vector<1x2x32xf32>
    %20 = tpu.matmul %19, %13, %cst_19 {dimension_numbers = #tpu.dot_dimension_numbers<[2], [0], [0, 1], [1], [0, 0, 0, 1, 1, 1], [], []>, precision = #tpu.contract_precision<fp32>} : vector<1x2x2xf32>, vector<2x32xf32>, vector<1x2x32xf32> -> vector<1x2x32xf32>
    %21 = vector.shape_cast %20 : vector<1x2x32xf32> to vector<1x2x1x32xf32>
    %22 = vector.shape_cast %21 : vector<1x2x1x32xf32> to vector<1x2x1x32xf32>
    %23 = vector.broadcast %22 : vector<1x2x1x32xf32> to vector<1x2x16x32xf32>
    %24 = vector.shape_cast %23 : vector<1x2x16x32xf32> to vector<1x32x32xf32>
    %25 = vector.shape_cast %24 : vector<1x32x32xf32> to vector<1x1x32x32xf32>
    %26 = vector.broadcast %25 : vector<1x1x32x32xf32> to vector<1x4x32x32xf32>
    %27 = arith.subf %3, %26 : vector<1x4x32x32xf32>
    %28 = arith.mulf %27, %27 : vector<1x4x32x32xf32>
    %cst_20 = arith.constant dense<0.000000e+00> : vector<1x32x32xf32>
    %29 = vector.multi_reduction <add>, %28, %cst_20 [1] : vector<1x4x32x32xf32> to vector<1x32x32xf32>
    %30 = vector.shape_cast %29 : vector<1x32x32xf32> to vector<1x2x16x32xf32>
    %cst_21 = arith.constant dense<0.000000e+00> : vector<1x2x32xf32>
    %31 = vector.multi_reduction <add>, %30, %cst_21 [2] : vector<1x2x16x32xf32> to vector<1x2x32xf32>
    %cst_22 = arith.constant dense<0.000000e+00> : vector<1x2x2xf32>
    %32 = tpu.matmul %31, %4, %cst_22 {dimension_numbers = #tpu.dot_dimension_numbers<[2], [0], [0, 1], [1], [0, 0, 0, 1, 1, 1], [], []>, precision = #tpu.contract_precision<fp32>} : vector<1x2x32xf32>, vector<32x2xf32>, vector<1x2x2xf32> -> vector<1x2x2xf32>
    %cst_23 = arith.constant 9.77517105E-4 : f32
    %33 = vector.broadcast %cst_23 : f32 to vector<1x2x2xf32>
    %34 = arith.mulf %32, %33 : vector<1x2x2xf32>
    %cst_24 = arith.constant 9.99999997E-7 : f32
    %35 = vector.broadcast %cst_24 : f32 to vector<1x2x2xf32>
    %36 = arith.addf %34, %35 : vector<1x2x2xf32>
    %37 = math.rsqrt %36 : vector<1x2x2xf32>
    %cst_25 = arith.constant dense<0.000000e+00> : vector<1x2x32xf32>
    %38 = tpu.matmul %37, %13, %cst_25 {dimension_numbers = #tpu.dot_dimension_numbers<[2], [0], [0, 1], [1], [0, 0, 0, 1, 1, 1], [], []>, precision = #tpu.contract_precision<fp32>} : vector<1x2x2xf32>, vector<2x32xf32>, vector<1x2x32xf32> -> vector<1x2x32xf32>
    %39 = vector.shape_cast %38 : vector<1x2x32xf32> to vector<1x2x1x32xf32>
    %40 = vector.shape_cast %39 : vector<1x2x1x32xf32> to vector<1x2x1x32xf32>
    %41 = vector.broadcast %40 : vector<1x2x1x32xf32> to vector<1x2x16x32xf32>
    %42 = vector.shape_cast %41 : vector<1x2x16x32xf32> to vector<1x32x32xf32>
    %43 = vector.shape_cast %42 : vector<1x32x32xf32> to vector<1x1x32x32xf32>
    %44 = vector.broadcast %43 : vector<1x1x32x32xf32> to vector<1x4x32x32xf32>
    %45 = arith.mulf %27, %44 : vector<1x4x32x32xf32>
    %46 = arith.subf %2, %45 : vector<1x4x32x32xf32>
    %47 = arith.mulf %46, %46 : vector<1x4x32x32xf32>
    %cst_26 = arith.constant dense<0.000000e+00> : vector<1x32x32xf32>
    %48 = vector.multi_reduction <add>, %47, %cst_26 [1] : vector<1x4x32x32xf32> to vector<1x32x32xf32>
    %49 = vector.shape_cast %48 : vector<1x32x32xf32> to vector<1x2x16x32xf32>
    %cst_27 = arith.constant dense<0.000000e+00> : vector<1x2x32xf32>
    %50 = vector.multi_reduction <add>, %49, %cst_27 [2] : vector<1x2x16x32xf32> to vector<1x2x32xf32>
    %cst_28 = arith.constant dense<0.000000e+00> : vector<1x2x2xf32>
    %51 = tpu.matmul %50, %4, %cst_28 {dimension_numbers = #tpu.dot_dimension_numbers<[2], [0], [0, 1], [1], [0, 0, 0, 1, 1, 1], [], []>, precision = #tpu.contract_precision<fp32>} : vector<1x2x32xf32>, vector<32x2xf32>, vector<1x2x2xf32> -> vector<1x2x2xf32>
    %c0_29 = arith.constant 0 : index
    %52 = arith.index_cast %1 : i32 to index
    %c0_30 = arith.constant 0 : index
    %53 = vector.load %arg7[%c0_29, %52, %c0_30] : memref<1x2x2xf32, #tpu.memory_space<vmem>>, vector<1x2x2xf32>
    tpu.vector_store %arg7[%c0_29, %52, %c0_30], %51 {strides = array<i32>} : memref<1x2x2xf32, #tpu.memory_space<vmem>>, vector<1x2x2xf32>,
    return
  }
  func.func @transform_0(%arg0: i32, %arg1: i32) -> (i32, i32, i32, i32) {
    %c0_i32 = arith.constant 0 : i32
    %c0_i32_0 = arith.constant 0 : i32
    %c0_i32_1 = arith.constant 0 : i32
    return %arg0, %c0_i32, %arg1, %c0_i32_0 : i32, i32, i32, i32
  }
  func.func @transform_1(%arg0: i32, %arg1: i32) -> (i32, i32, i32, i32) {
    %c0_i32 = arith.constant 0 : i32
    %c0_i32_0 = arith.constant 0 : i32
    %c0_i32_1 = arith.constant 0 : i32
    return %arg0, %c0_i32, %arg1, %c0_i32_0 : i32, i32, i32, i32
  }
  func.func @transform_2(%arg0: i32, %arg1: i32) -> (i32, i32) {
    %c0_i32 = arith.constant 0 : i32
    %c0_i32_0 = arith.constant 0 : i32
    %c0_i32_1 = arith.constant 0 : i32
    return %c0_i32, %c0_i32_0 : i32, i32
  }
  func.func @transform_3(%arg0: i32, %arg1: i32) -> (i32, i32) {
    %c0_i32 = arith.constant 0 : i32
    %c0_i32_0 = arith.constant 0 : i32
    %c0_i32_1 = arith.constant 0 : i32
    return %c0_i32, %c0_i32_0 : i32, i32
  }
  func.func @transform_4(%arg0: i32, %arg1: i32) -> (i32, i32, i32) {
    %c0_i32 = arith.constant 0 : i32
    %c0_i32_0 = arith.constant 0 : i32
    %c0_i32_1 = arith.constant 0 : i32
    return %arg0, %c0_i32, %c0_i32_0 : i32, i32, i32
  }
  func.func @transform_5(%arg0: i32, %arg1: i32) -> (i32, i32, i32) {
    %c0_i32 = arith.constant 0 : i32
    %c0_i32_0 = arith.constant 0 : i32
    %c0_i32_1 = arith.constant 0 : i32
    return %arg0, %c0_i32, %c0_i32_0 : i32, i32, i32
  }
}

</mosaic_0001>

<llo_original>
// kernel: tpu_custom_call.1
$region0: #{tpu_custom_call.1}
  #allocation0 [shape = 'u32[]', space=smem, size = 0x4, offset = 0x4, fixed_abs, tag = 'smem constant byte address 0x4 - core index']
  #allocation1 [shape = 'u32[72,128]{1,0:T(1,128)}', space=vmem, size = 0x9000, scoped, tag = 'internal scratch']
  %s0 = inlined_call_operand.hbm [shape: f32[2,4,32,32], index: 0, kind: input, shape index: {}]
  %s1 = inlined_call_operand.hbm [shape: f32[2,4,32,32], index: 1, kind: input, shape index: {}]
  %s2 = inlined_call_operand.vmem [shape: f32[32,2], index: 2, kind: input, shape index: {}]
  %s3 = inlined_call_operand.vmem [shape: f32[2,32], index: 3, kind: input, shape index: {}]
  %s4 = inlined_call_operand.hbm [shape: f32[2,2,2], index: 4, kind: output, shape index: {0}]
  %s5 = inlined_call_operand.hbm [shape: f32[2,2,2], index: 5, kind: output, shape index: {1}]
  %6 = xla_tuple %s4, %s5
  %s7 = sld [smem:[#allocation0]]
  $region65: #{tpu_custom_call.1} parent=0
    _
  %s9 = ssub.s32 1, %s7
  %s10 = scalar_select 0, %s9, %s7
  $region1: #{tpu_custom_call.1} parent=0
    #allocation2 [shape = 'u8[131072]{0}', space=vmem, size = 0x20000, scoped, tag = 'input window, operand 0']
    #allocation3 [shape = 's32[2]{0}', space=sflag, size = 0x8, scoped, tag = 'scoped memory for tpu_custom_call.1']
    #allocation4 [shape = 's32[2]{0}', space=sflag, size = 0x8, scoped, tag = 'scoped memory for tpu_custom_call.1']
    #allocation5 [shape = 'u8[131072]{0}', space=vmem, size = 0x20000, scoped, tag = 'input window, operand 1']
    #allocation6 [shape = 's32[2]{0}', space=sflag, size = 0x8, scoped, tag = 'scoped memory for tpu_custom_call.1']
    #allocation7 [shape = 'u8[2048]{0}', space=vmem, size = 0x800, scoped, tag = 'output window, operand 0']
    #allocation8 [shape = 'u8[2048]{0}', space=vmem, size = 0x800, scoped, tag = 'output window, operand 1']
    #allocation9 [shape = 's32[2]{0}', space=sflag, size = 0x8, scoped, tag = 'scoped memory for tpu_custom_call.1']
    %11 = vsyncpa [#allocation3], 0
    %s12 = scalar_lea.sflag [#allocation3], 1
    %13 = vsyncpa %s12, 0
    %14 = vsyncpa [#allocation6], 0
    %s15 = scalar_lea.sflag [#allocation6], 1
    %16 = vsyncpa %s15, 0
    %17 = vsyncpa [#allocation4], 0
    %s18 = scalar_lea.sflag [#allocation4], 1
    %19 = vsyncpa %s18, 0
    %20 = vsyncpa [#allocation9], 0
    %s21 = scalar_lea.sflag [#allocation9], 1
    %22 = vsyncpa %s21, 0
    loop: start=0, step=1, limit=4
    $region2: #{tpu_custom_call.1} parent=1 // loop_pre_header
      _
    $region3: #{tpu_custom_call.1} parent=1 // loop_header
      %s24 = sphi 0, %s28
      %p25 = scmp.ge.s32.totalorder %s24, 4
      %s31 = sphi 0, %s43
      %s32 = sphi 0, %s39
      %s33 = sphi 0, %s31
      %s34 = sphi 0, %s32
      %s35 = sphi 0, %s33
      %s36 = sphi 0, %s34
      %s48 = sphi 0, %s50
      %s51 = sphi 0, %s48
      %s52 = sphi 0, %s51
      %s68 = sphi 0, %s52
      %s76 = sphi 0, %s78
      %s79 = sphi 0, %s76
      %s80 = sphi 0, %s79
      %s96 = sphi 0, %s80
      %s100 = sphi 0, %s100
      %s102 = sphi 0, %s100
      %s103 = sphi 0, %s102
      %s117 = sphi 0, %s103
      %s121 = sphi 0, %s121
      %s123 = sphi 0, %s121
      %s124 = sphi 0, %s123
      %s138 = sphi 0, %s124
      %s144 = sphi 0, %s146
      %s147 = sphi 0, %s144
      %s148 = sphi 0, %s147
      %s164 = sphi 0, %s148
      %s170 = sphi 0, %s172
      %s173 = sphi 0, %s170
      %s174 = sphi 0, %s173
      %s190 = sphi 0, %s174
    $region4: #{tpu_custom_call.1} parent=1 // loop_header_branch
      %27 = sbr.rel (%p25) target = $region8
    $region5: #{tpu_custom_call.1} parent=1 // loop_body
      %s29 = ssub.s32 %s24, 1
      %s30 = ssub.s32 %s24, 2
      %s37 = sadd.s32 1, %s32
      %p38 = scmp.ge.s32.totalorder %s37, 1
      %s39 = scalar_select %p38, 0, %s37
      %s40 = sadd.s32 1, %s31
      %s41 = scalar_select %p38, %s40, %s31
      %p42 = scmp.ge.s32.totalorder %s41, 2
      %s43 = scalar_select %p42, 0, %s41
      %s44 = ssub.s32 %s31, %s43
      %s45 = ssub.s32 %s32, %s39
      %s46 = sor.u32 %s44, %s45
      %p47 = scmp.eq.s32.totalorder %s46, 0
      %s49 = sadd.s32 %s48, 1
      %s50 = scalar_select %p47, %s48, %s49
      %p53 = pneg %p47
      %p54 = scmp.eq.s32.totalorder %s24, 1
      %p55 = por %p53, %p54
      %p56 = scmp.ne.s32.totalorder %s48, %s51
      %p57 = scmp.eq.s32.totalorder %s24, 0
      %p58 = por %p56, %p57
      %p59 = scmp.ne.s32.totalorder %s48, %s51
      %p60 = scmp.eq.s32.totalorder %s29, 1
      %p61 = por %p59, %p60
      %p62 = scmp.ne.s32.totalorder %s51, %s52
      %p63 = scmp.eq.s32.totalorder %s29, 0
      %p64 = por %p62, %p63
      %p65 = scmp.ne.s32.totalorder %s51, %s52
      %p66 = scmp.eq.s32.totalorder %s30, 1
      %p67 = por %p65, %p66
      %p69 = scmp.ne.s32.totalorder %s52, %s68
      %p70 = scmp.eq.s32.totalorder %s30, 0
      %p71 = por %p69, %p70
      %s72 = ssub.s32 %s31, %s43
      %s73 = ssub.s32 %s32, %s39
      %s74 = sor.u32 %s72, %s73
      %p75 = scmp.eq.s32.totalorder %s74, 0
      %s77 = sadd.s32 %s76, 1
      %s78 = scalar_select %p75, %s76, %s77
      %p81 = pneg %p75
      %p82 = scmp.eq.s32.totalorder %s24, 1
      %p83 = por %p81, %p82
      %p84 = scmp.ne.s32.totalorder %s76, %s79
      %p85 = scmp.eq.s32.totalorder %s24, 0
      %p86 = por %p84, %p85
      %p87 = scmp.ne.s32.totalorder %s76, %s79
      %p88 = scmp.eq.s32.totalorder %s29, 1
      %p89 = por %p87, %p88
      %p90 = scmp.ne.s32.totalorder %s79, %s80
      %p91 = scmp.eq.s32.totalorder %s29, 0
      %p92 = por %p90, %p91
      %p93 = scmp.ne.s32.totalorder %s79, %s80
      %p94 = scmp.eq.s32.totalorder %s30, 1
      %p95 = por %p93, %p94
      %p97 = scmp.ne.s32.totalorder %s80, %s96
      %p98 = scmp.eq.s32.totalorder %s30, 0
      %p99 = por %p97, %p98
      %s101 = sadd.s32 %s100, 1
      %p104 = scmp.eq.s32.totalorder %s24, 1
      %p105 = scmp.ne.s32.totalorder %s100, %s102
      %p106 = scmp.eq.s32.totalorder %s24, 0
      %p107 = por %p105, %p106
      %p108 = scmp.ne.s32.totalorder %s100, %s102
      %p109 = scmp.eq.s32.totalorder %s29, 1
      %p110 = por %p108, %p109
      %p111 = scmp.ne.s32.totalorder %s102, %s103
      %p112 = scmp.eq.s32.totalorder %s29, 0
      %p113 = por %p111, %p112
      %p114 = scmp.ne.s32.totalorder %s102, %s103
      %p115 = scmp.eq.s32.totalorder %s30, 1
      %p116 = por %p114, %p115
      %p118 = scmp.ne.s32.totalorder %s103, %s117
      %p119 = scmp.eq.s32.totalorder %s30, 0
      %p120 = por %p118, %p119
      %s122 = sadd.s32 %s121, 1
      %p125 = scmp.eq.s32.totalorder %s24, 1
      %p126 = scmp.ne.s32.totalorder %s121, %s123
      %p127 = scmp.eq.s32.totalorder %s24, 0
      %p128 = por %p126, %p127
      %p129 = scmp.ne.s32.totalorder %s121, %s123
      %p130 = scmp.eq.s32.totalorder %s29, 1
      %p131 = por %p129, %p130
      %p132 = scmp.ne.s32.totalorder %s123, %s124
      %p133 = scmp.eq.s32.totalorder %s29, 0
      %p134 = por %p132, %p133
      %p135 = scmp.ne.s32.totalorder %s123, %s124
      %p136 = scmp.eq.s32.totalorder %s30, 1
      %p137 = por %p135, %p136
      %p139 = scmp.ne.s32.totalorder %s124, %s138
      %p140 = scmp.eq.s32.totalorder %s30, 0
      %p141 = por %p139, %p140
      %s142 = ssub.s32 %s31, %s43
      %p143 = scmp.eq.s32.totalorder %s142, 0
      %s145 = sadd.s32 %s144, 1
      %s146 = scalar_select %p143, %s144, %s145
      %p149 = pneg %p143
      %p150 = scmp.eq.s32.totalorder %s24, 1
      %p151 = por %p149, %p150
      %p152 = scmp.ne.s32.totalorder %s144, %s147
      %p153 = scmp.eq.s32.totalorder %s24, 0
      %p154 = por %p152, %p153
      %p155 = scmp.ne.s32.totalorder %s144, %s147
      %p156 = scmp.eq.s32.totalorder %s29, 1
      %p157 = por %p155, %p156
      %p158 = scmp.ne.s32.totalorder %s147, %s148
      %p159 = scmp.eq.s32.totalorder %s29, 0
      %p160 = por %p158, %p159
      %p161 = scmp.ne.s32.totalorder %s147, %s148
      %p162 = scmp.eq.s32.totalorder %s30, 1
      %p163 = por %p161, %p162
      %p165 = scmp.ne.s32.totalorder %s148, %s164
      %p166 = scmp.eq.s32.totalorder %s30, 0
      %p167 = por %p165, %p166
      %s168 = ssub.s32 %s31, %s43
      %p169 = scmp.eq.s32.totalorder %s168, 0
      %s171 = sadd.s32 %s170, 1
      %s172 = scalar_select %p169, %s170, %s171
      %p175 = pneg %p169
      %p176 = scmp.eq.s32.totalorder %s24, 1
      %p177 = por %p175, %p176
      %p178 = scmp.ne.s32.totalorder %s170, %s173
      %p179 = scmp.eq.s32.totalorder %s24, 0
      %p180 = por %p178, %p179
      %p181 = scmp.ne.s32.totalorder %s170, %s173
      %p182 = scmp.eq.s32.totalorder %s29, 1
      %p183 = por %p181, %p182
      %p184 = scmp.ne.s32.totalorder %s173, %s174
      %p185 = scmp.eq.s32.totalorder %s29, 0
      %p186 = por %p184, %p185
      %p187 = scmp.ne.s32.totalorder %s173, %s174
      %p188 = scmp.eq.s32.totalorder %s30, 1
      %p189 = por %p187, %p188
      %p191 = scmp.ne.s32.totalorder %s174, %s190
      %p192 = scmp.eq.s32.totalorder %s30, 0
      %p193 = por %p191, %p192
      %p194 = scmp.le.s32.totalorder 1, %s24
      %p195 = scmp.lt.s32.totalorder %s24, 3
      %p196 = pnand %p194, %p195
      %p197 = pneg %p196
      // Predicated region
      $region9: #{tpu_custom_call.1} parent=5 // pred_check
        _
      $region10: #{tpu_custom_call.1} parent=5 // pred_check_branch
        %199 = sbr.rel (%p196) target = $region12
      $region11: #{tpu_custom_call.1} parent=5 // pred_region
        %s200 = ssub.s32 %s24, 1
        // Predicated region
        $region13: #{tpu_custom_call.1} parent=11 // pred_check
          %p201 = pneg %p113
        $region14: #{tpu_custom_call.1} parent=11 // pred_check_branch
          %203 = sbr.rel (%p201) target = $region16
        $region15: #{tpu_custom_call.1} parent=11 // pred_region
          _
        $region16: #{tpu_custom_call.1} parent=11 // pred_fallthru
          _
        // Predicated region
        $region17: #{tpu_custom_call.1} parent=11 // pred_check
          %p204 = pneg %p134
        $region18: #{tpu_custom_call.1} parent=11 // pred_check_branch
          %206 = sbr.rel (%p204) target = $region20
        $region19: #{tpu_custom_call.1} parent=11 // pred_region
          _
        $region20: #{tpu_custom_call.1} parent=11 // pred_fallthru
          _
      $region12: #{tpu_custom_call.1} parent=5 // pred_fallthru
        _
      %p207 = scmp.lt.s32.totalorder %s24, 2
      // Predicated region
      $region21: #{tpu_custom_call.1} parent=5 // pred_check
        %p208 = pneg %p207
      $region22: #{tpu_custom_call.1} parent=5 // pred_check_branch
        %210 = sbr.rel (%p208) target = $region24
      $region23: #{tpu_custom_call.1} parent=5 // pred_region
        // Predicated region
        $region25: #{tpu_custom_call.1} parent=23 // pred_check
          %p211 = pneg %p58
        $region26: #{tpu_custom_call.1} parent=23 // pred_check_branch
          %213 = sbr.rel (%p211) target = $region28
        $region27: #{tpu_custom_call.1} parent=23 // pred_region
          %s214 = sand.u32 %s48, 1
          %s215 = scalar_lea.sflag [#allocation3], %s214
          %s216 = sand.u32 %s48, 1
          %s217 = smul.addr %s216, 128
          %s218 = scalar_lea.vmem [#allocation2], %s217
          %s219 = smul.u32 4, %s32
          %221 = vsyncadd %s215, 0
          %s222 = smul.addr %s31, 16
          %s223 = sadd.s32 %s219, %s222
          %s224 = smul.addr %s223, 8
          %s225 = scalar_lea.hbm %s0, %s224
          %s226 = sshll.u32 %s225, 4
          %s227 = int_to_ptr.hbm [resolvable:$true] %s226
          %s228 = sshll.u32 %s218, 4
          %s229 = int_to_ptr.vmem [resolvable:$true] %s228
          %234 = dma.hbm_to_vmem [thread:$0]  %s227, 2048, %s229, %s215, 128, 128, 8
        $region28: #{tpu_custom_call.1} parent=23 // pred_fallthru
          _
        // Predicated region
        $region29: #{tpu_custom_call.1} parent=23 // pred_check
          %p235 = pneg %p86
        $region30: #{tpu_custom_call.1} parent=23 // pred_check_branch
          %237 = sbr.rel (%p235) target = $region32
        $region31: #{tpu_custom_call.1} parent=23 // pred_region
          %s238 = sand.u32 %s76, 1
          %s239 = scalar_lea.sflag [#allocation6], %s238
          %s240 = sand.u32 %s76, 1
          %s241 = smul.addr %s240, 128
          %s242 = scalar_lea.vmem [#allocation5], %s241
          %s243 = smul.u32 4, %s32
          %245 = vsyncadd %s239, 0
          %s246 = smul.addr %s31, 16
          %s247 = sadd.s32 %s243, %s246
          %s248 = smul.addr %s247, 8
          %s249 = scalar_lea.hbm %s1, %s248
          %s250 = sshll.u32 %s249, 4
          %s251 = int_to_ptr.hbm [resolvable:$true] %s250
          %s252 = sshll.u32 %s242, 4
          %s253 = int_to_ptr.vmem [resolvable:$true] %s252
          %258 = dma.hbm_to_vmem [thread:$0]  %s251, 2048, %s253, %s239, 128, 128, 8
        $region32: #{tpu_custom_call.1} parent=23 // pred_fallthru
          _
      $region24: #{tpu_custom_call.1} parent=5 // pred_fallthru
        _
      %p259 = scmp.le.s32.totalorder 1, %s24
      %p260 = scmp.lt.s32.totalorder %s24, 3
      %p261 = pnand %p259, %p260
      %p262 = pneg %p261
      // Predicated region
      $region33: #{tpu_custom_call.1} parent=5 // pred_check
        _
      $region34: #{tpu_custom_call.1} parent=5 // pred_check_branch
        %264 = sbr.rel (%p261) target = $region36
      $region35: #{tpu_custom_call.1} parent=5 // pred_region
        %s265 = ssub.s32 %s24, 1
        %s266 = sand.u32 %s51, 1
        %s267 = scalar_lea.sflag [#allocation3], %s266
        %s268 = sand.u32 %s51, 1
        %s269 = smul.addr %s268, 128
        %s270 = scalar_lea.vmem [#allocation2], %s269
        // Predicated region
        $region37: #{tpu_custom_call.1} parent=35 // pred_check
          %p271 = pneg %p64
        $region38: #{tpu_custom_call.1} parent=35 // pred_check_branch
          %273 = sbr.rel (%p271) target = $region40
        $region39: #{tpu_custom_call.1} parent=35 // pred_region
          %275 = dma.done %s267, 2048
        $region40: #{tpu_custom_call.1} parent=35 // pred_fallthru
          _
        %s276 = sand.u32 %s79, 1
        %s277 = scalar_lea.sflag [#allocation6], %s276
        %s278 = sand.u32 %s79, 1
        %s279 = smul.addr %s278, 128
        %s280 = scalar_lea.vmem [#allocation5], %s279
        // Predicated region
        $region41: #{tpu_custom_call.1} parent=35 // pred_check
          %p281 = pneg %p92
        $region42: #{tpu_custom_call.1} parent=35 // pred_check_branch
          %283 = sbr.rel (%p281) target = $region44
        $region43: #{tpu_custom_call.1} parent=35 // pred_region
          %285 = dma.done %s277, 2048
        $region44: #{tpu_custom_call.1} parent=35 // pred_fallthru
          _
        %s286 = sand.u32 %s51, 1
        %s287 = scalar_lea.sflag [#allocation3], %s286
        %s288 = sand.u32 %s51, 1
        %s289 = smul.addr %s288, 128
        %s290 = scalar_lea.vmem [#allocation2], %s289
        %p291 = pneg %p64
        %p292 = pneg %p61
        %s293 = sand.u32 %s79, 1
        %s294 = scalar_lea.sflag [#allocation6], %s293
        %s295 = sand.u32 %s79, 1
        %s296 = smul.addr %s295, 128
        %s297 = scalar_lea.vmem [#allocation5], %s296
        %p298 = pneg %p92
        %p299 = pneg %p89
        %p300 = pneg %p113
        %p301 = pneg %p110
        %p302 = pneg %p134
        %p303 = pneg %p131
        %p304 = pneg %p160
        %p305 = pneg %p157
        %s306 = sand.u32 %s147, 1
        %s307 = scalar_lea.sflag [#allocation4], %s306
        %s308 = sand.u32 %s147, 1
        %s309 = smul.addr %s308, 2
        %s310 = scalar_lea.vmem [#allocation7], %s309
        %p311 = pneg %p186
        %p312 = pneg %p183
        %s313 = sand.u32 %s173, 1
        %s314 = scalar_lea.sflag [#allocation9], %s313
        %s315 = sand.u32 %s173, 1
        %s316 = smul.addr %s315, 2
        %s317 = scalar_lea.vmem [#allocation8], %s316
        %s318 = smul.u32 4, %s34
        %s319 = smul.u32 4, %s34
        %s320 = smul.u32 %s34, 2
        %v321 = vld [vmem:[%s270] sm:$0xff]
        %v322 = vld [vmem:[%s270 + $0x8] sm:$0xff]
        %v323 = vld [vmem:[%s270 + $0x10] sm:$0xff]
        %v324 = vld [vmem:[%s270 + $0x18] sm:$0xff]
        %v325 = vld [vmem:[%s270 + $0x20] sm:$0xff]
        %v326 = vld [vmem:[%s270 + $0x28] sm:$0xff]
        %v327 = vld [vmem:[%s270 + $0x30] sm:$0xff]
        %v328 = vld [vmem:[%s270 + $0x38] sm:$0xff]
        %v329 = vld [vmem:[%s270 + $0x40] sm:$0xff]
        %v330 = vld [vmem:[%s270 + $0x48] sm:$0xff]
        %v331 = vld [vmem:[%s270 + $0x50] sm:$0xff]
        %v332 = vld [vmem:[%s270 + $0x58] sm:$0xff]
        %v333 = vld [vmem:[%s270 + $0x60] sm:$0xff]
        %v334 = vld [vmem:[%s270 + $0x68] sm:$0xff]
        %v335 = vld [vmem:[%s270 + $0x70] sm:$0xff]
        %v336 = vld [vmem:[%s270 + $0x78] sm:$0xff]
        %v337 = vld [vmem:[%s280] sm:$0xff]
        %v338 = vld [vmem:[%s280 + $0x8] sm:$0xff]
        %v339 = vld [vmem:[%s280 + $0x10] sm:$0xff]
        %v340 = vld [vmem:[%s280 + $0x18] sm:$0xff]
        %v341 = vld [vmem:[%s280 + $0x20] sm:$0xff]
        %v342 = vld [vmem:[%s280 + $0x28] sm:$0xff]
        %v343 = vld [vmem:[%s280 + $0x30] sm:$0xff]
        %v344 = vld [vmem:[%s280 + $0x38] sm:$0xff]
        %v345 = vld [vmem:[%s280 + $0x40] sm:$0xff]
        %v346 = vld [vmem:[%s280 + $0x48] sm:$0xff]
        %v347 = vld [vmem:[%s280 + $0x50] sm:$0xff]
        %v348 = vld [vmem:[%s280 + $0x58] sm:$0xff]
        %v349 = vld [vmem:[%s280 + $0x60] sm:$0xff]
        %v350 = vld [vmem:[%s280 + $0x68] sm:$0xff]
        %v351 = vld [vmem:[%s280 + $0x70] sm:$0xff]
        %v352 = vld [vmem:[%s280 + $0x78] sm:$0xff]
        %v353 = vld [vmem:[%s2] sm:$0xff]
        %v354 = vld [vmem:[%s2 + $0x8] sm:$0xff]
        %v355 = vld [vmem:[%s2 + $0x10] sm:$0xff]
        %v356 = vld [vmem:[%s2 + $0x18] sm:$0xff]
        %v357 = vsub.f32 %v321, %v337
        %v358 = vsub.f32 %v322, %v338
        %v359 = vsub.f32 %v323, %v339
        %v360 = vsub.f32 %v324, %v340
        %v361 = vsub.f32 %v325, %v341
        %v362 = vsub.f32 %v326, %v342
        %v363 = vsub.f32 %v327, %v343
        %v364 = vsub.f32 %v328, %v344
        %v365 = vsub.f32 %v329, %v345
        %v366 = vsub.f32 %v330, %v346
        %v367 = vsub.f32 %v331, %v347
        %v368 = vsub.f32 %v332, %v348
        %v369 = vsub.f32 %v333, %v349
        %v370 = vsub.f32 %v334, %v350
        %v371 = vsub.f32 %v335, %v351
        %v372 = vsub.f32 %v336, %v352
        %v373 = vmul.f32 %v357, %v357
        %v374 = vmul.f32 %v358, %v358
        %v375 = vmul.f32 %v359, %v359
        %v376 = vmul.f32 %v360, %v360
        %v377 = vmul.f32 %v361, %v361
        %v378 = vmul.f32 %v362, %v362
        %v379 = vmul.f32 %v363, %v363
        %v380 = vmul.f32 %v364, %v364
        %v381 = vmul.f32 %v365, %v365
        %v382 = vmul.f32 %v366, %v366
        %v383 = vmul.f32 %v367, %v367
        %v384 = vmul.f32 %v368, %v368
        %v385 = vmul.f32 %v369, %v369
        %v386 = vmul.f32 %v370, %v370
        %v387 = vmul.f32 %v371, %v371
        %v388 = vmul.f32 %v372, %v372
        %vm389 = vcmask 261120
        %v390 = vsel %vm389, %v373, 0.0
        %v391 = vsel %vm389, %v377, 0.0
        %v392 = vadd.f32 %v390, %v391
        %v393 = vsel %vm389, %v381, 0.0
        %v394 = vadd.f32 %v392, %v393
        %v395 = vsel %vm389, %v385, 0.0
        %v396 = vadd.f32 %v394, %v395
        %v397 = vsel %vm389, %v374, 0.0
        %v398 = vsel %vm389, %v378, 0.0
        %v399 = vadd.f32 %v397, %v398
        %v400 = vsel %vm389, %v382, 0.0
        %v401 = vadd.f32 %v399, %v400
        %v402 = vsel %vm389, %v386, 0.0
        %v403 = vadd.f32 %v401, %v402
        %v404 = vsel %vm389, %v375, 0.0
        %v405 = vsel %vm389, %v379, 0.0
        %v406 = vadd.f32 %v404, %v405
        %v407 = vsel %vm389, %v383, 0.0
        %v408 = vadd.f32 %v406, %v407
        %v409 = vsel %vm389, %v387, 0.0
        %v410 = vadd.f32 %v408, %v409
        %v411 = vsel %vm389, %v376, 0.0
        %v412 = vsel %vm389, %v380, 0.0
        %v413 = vadd.f32 %v411, %v412
        %v414 = vsel %vm389, %v384, 0.0
        %v415 = vadd.f32 %v413, %v414
        %v416 = vsel %vm389, %v388, 0.0
        %v417 = vadd.f32 %v415, %v416
        %v418 = vsel %vm389, %v396, 0.0
        %v419 = vsel %vm389, %v403, 0.0
        %v420 = vadd.f32 %v418, %v419
        %v421 = vrot.slane %v420, 4
        %v422 = vadd.f32 %v420, %v421
        %v423 = vrot.slane %v422, 2
        %v424 = vadd.f32 %v422, %v423
        %v425 = vrot.slane %v424, 1
        %v426 = vadd.f32 %v424, %v425
        %v427 = vsel %vm389, %v410, 0.0
        %v428 = vsel %vm389, %v417, 0.0
        %v429 = vadd.f32 %v427, %v428
        %v430 = vrot.slane %v429, 4
        %v431 = vadd.f32 %v429, %v430
        %v432 = vrot.slane %v431, 2
        %v433 = vadd.f32 %v431, %v432
        %v434 = vrot.slane %v433, 1
        %v435 = vadd.f32 %v433, %v434
        %vm438 = vcmask 1041409
        %v439 = vsel %vm438, %v435, %v426
        %v440 = vsel %vm389, %v439, 0
        %442 = vmatpush.msra.mxu0 0.0
        %443 = vmatpush.msra.mxu0 0.0
        %444 = vmatpush.msra.mxu0 0.0
        %445 = vmatpush.msra.mxu0 0.0
        %446 = vmatpush.msra.mxu0 0.0
        %447 = vmatpush.msra.mxu0 0.0
        %448 = vmatpush.msra.mxu0 0.0
        %449 = vmatpush.msra.mxu0 0.0
        %450 = vmatpush.msra.mxu0 0.0
        %451 = vmatpush.msra.mxu0 0.0
        %452 = vmatpush.msra.mxu0 0.0
        %453 = vmatpush.msra.mxu0 0.0
        %v454 = vand.u32 %v356, 4294901760
        %455 = vmatpush.msra.mxu0 %v454
        %v456 = vand.u32 %v355, 4294901760
        %457 = vmatpush.msra.mxu0 %v456
        %v458 = vand.u32 %v354, 4294901760
        %459 = vmatpush.msra.mxu0 %v458
        %v460 = vand.u32 %v353, 4294901760
        %461 = vmatpush.msra.mxu0 %v460
        %v462 = vand.u32 %v440, 4294901760
        %v463 = vsub.f32 %v440, %v462
        %v464 = vand.u32 %v463, 4294901760
        %v465 = vsub.f32 %v463, %v464
        %v466 = vand.u32 %v465, 4294901760
        %467 = vmatmul.f32.gmra.mxu0 %v466
        %v468 = vpop.f32.mrf.mxu0
        %v469 = vadd.f32 0.0, %v468
        %470 = vdwg.mxu0
        %471 = vmatpush.msra.mxu0 0.0
        %472 = vmatpush.msra.mxu0 0.0
        %473 = vmatpush.msra.mxu0 0.0
        %474 = vmatpush.msra.mxu0 0.0
        %475 = vmatpush.msra.mxu0 0.0
        %476 = vmatpush.msra.mxu0 0.0
        %477 = vmatpush.msra.mxu0 0.0
        %478 = vmatpush.msra.mxu0 0.0
        %479 = vmatpush.msra.mxu0 0.0
        %480 = vmatpush.msra.mxu0 0.0
        %481 = vmatpush.msra.mxu0 0.0
        %482 = vmatpush.msra.mxu0 0.0
        %v483 = vand.u32 %v356, 4294901760
        %v484 = vsub.f32 %v356, %v483
        %v485 = vand.u32 %v484, 4294901760
        %v486 = vsub.f32 %v484, %v485
        %v487 = vand.u32 %v486, 4294901760
        %488 = vmatpush.msra.mxu0 %v487
        %v489 = vand.u32 %v355, 4294901760
        %v490 = vsub.f32 %v355, %v489
        %v491 = vand.u32 %v490, 4294901760
        %v492 = vsub.f32 %v490, %v491
        %v493 = vand.u32 %v492, 4294901760
        %494 = vmatpush.msra.mxu0 %v493
        %v495 = vand.u32 %v354, 4294901760
        %v496 = vsub.f32 %v354, %v495
        %v497 = vand.u32 %v496, 4294901760
        %v498 = vsub.f32 %v496, %v497
        %v499 = vand.u32 %v498, 4294901760
        %500 = vmatpush.msra.mxu0 %v499
        %v501 = vand.u32 %v353, 4294901760
        %v502 = vsub.f32 %v353, %v501
        %v503 = vand.u32 %v502, 4294901760
        %v504 = vsub.f32 %v502, %v503
        %v505 = vand.u32 %v504, 4294901760
        %506 = vmatpush.msra.mxu0 %v505
        %v507 = vand.u32 %v440, 4294901760
        %508 = vmatmul.f32.gmra.mxu0 %v507
        %v509 = vpop.f32.mrf.mxu0
        %v510 = vadd.f32 %v469, %v509
        %511 = vdwg.mxu0
        %512 = vmatpush.msra.mxu0 0.0
        %513 = vmatpush.msra.mxu0 0.0
        %514 = vmatpush.msra.mxu0 0.0
        %515 = vmatpush.msra.mxu0 0.0
        %516 = vmatpush.msra.mxu0 0.0
        %517 = vmatpush.msra.mxu0 0.0
        %518 = vmatpush.msra.mxu0 0.0
        %519 = vmatpush.msra.mxu0 0.0
        %520 = vmatpush.msra.mxu0 0.0
        %521 = vmatpush.msra.mxu0 0.0
        %522 = vmatpush.msra.mxu0 0.0
        %523 = vmatpush.msra.mxu0 0.0
        %v524 = vand.u32 %v356, 4294901760
        %v525 = vsub.f32 %v356, %v524
        %526 = vmatpush.msra.mxu0 %v525
        %v527 = vand.u32 %v355, 4294901760
        %v528 = vsub.f32 %v355, %v527
        %529 = vmatpush.msra.mxu0 %v528
        %v530 = vand.u32 %v354, 4294901760
        %v531 = vsub.f32 %v354, %v530
        %532 = vmatpush.msra.mxu0 %v531
        %v533 = vand.u32 %v353, 4294901760
        %v534 = vsub.f32 %v353, %v533
        %535 = vmatpush.msra.mxu0 %v534
        %v536 = vand.u32 %v440, 4294901760
        %v537 = vsub.f32 %v440, %v536
        %538 = vmatmul.f32.gmra.mxu0 %v537
        %v539 = vpop.f32.mrf.mxu0
        %v540 = vadd.f32 %v510, %v539
        %541 = vdwg.mxu0
        %542 = vmatpush.msra.mxu0 0.0
        %543 = vmatpush.msra.mxu0 0.0
        %544 = vmatpush.msra.mxu0 0.0
        %545 = vmatpush.msra.mxu0 0.0
        %546 = vmatpush.msra.mxu0 0.0
        %547 = vmatpush.msra.mxu0 0.0
        %548 = vmatpush.msra.mxu0 0.0
        %549 = vmatpush.msra.mxu0 0.0
        %550 = vmatpush.msra.mxu0 0.0
        %551 = vmatpush.msra.mxu0 0.0
        %552 = vmatpush.msra.mxu0 0.0
        %553 = vmatpush.msra.mxu0 0.0
        %v554 = vand.u32 %v356, 4294901760
        %555 = vmatpush.msra.mxu0 %v554
        %v556 = vand.u32 %v355, 4294901760
        %557 = vmatpush.msra.mxu0 %v556
        %v558 = vand.u32 %v354, 4294901760
        %559 = vmatpush.msra.mxu0 %v558
        %v560 = vand.u32 %v353, 4294901760
        %561 = vmatpush.msra.mxu0 %v560
        %v562 = vand.u32 %v440, 4294901760
        %v563 = vsub.f32 %v440, %v562
        %v564 = vand.u32 %v563, 4294901760
        %565 = vmatmul.f32.gmra.mxu0 %v564
        %v566 = vpop.f32.mrf.mxu0
        %v567 = vadd.f32 %v540, %v566
        %568 = vdwg.mxu0
        %569 = vmatpush.msra.mxu0 0.0
        %570 = vmatpush.msra.mxu0 0.0
        %571 = vmatpush.msra.mxu0 0.0
        %572 = vmatpush.msra.mxu0 0.0
        %573 = vmatpush.msra.mxu0 0.0
        %574 = vmatpush.msra.mxu0 0.0
        %575 = vmatpush.msra.mxu0 0.0
        %576 = vmatpush.msra.mxu0 0.0
        %577 = vmatpush.msra.mxu0 0.0
        %578 = vmatpush.msra.mxu0 0.0
        %579 = vmatpush.msra.mxu0 0.0
        %580 = vmatpush.msra.mxu0 0.0
        %v581 = vand.u32 %v356, 4294901760
        %v582 = vsub.f32 %v356, %v581
        %v583 = vand.u32 %v582, 4294901760
        %584 = vmatpush.msra.mxu0 %v583
        %v585 = vand.u32 %v355, 4294901760
        %v586 = vsub.f32 %v355, %v585
        %v587 = vand.u32 %v586, 4294901760
        %588 = vmatpush.msra.mxu0 %v587
        %v589 = vand.u32 %v354, 4294901760
        %v590 = vsub.f32 %v354, %v589
        %v591 = vand.u32 %v590, 4294901760
        %592 = vmatpush.msra.mxu0 %v591
        %v593 = vand.u32 %v353, 4294901760
        %v594 = vsub.f32 %v353, %v593
        %v595 = vand.u32 %v594, 4294901760
        %596 = vmatpush.msra.mxu0 %v595
        %v597 = vand.u32 %v440, 4294901760
        %598 = vmatmul.f32.gmra.mxu0 %v597
        %v599 = vpop.f32.mrf.mxu0
        %v600 = vadd.f32 %v567, %v599
        %601 = vdwg.mxu0
        %602 = vmatpush.msra.mxu0 0.0
        %603 = vmatpush.msra.mxu0 0.0
        %604 = vmatpush.msra.mxu0 0.0
        %605 = vmatpush.msra.mxu0 0.0
        %606 = vmatpush.msra.mxu0 0.0
        %607 = vmatpush.msra.mxu0 0.0
        %608 = vmatpush.msra.mxu0 0.0
        %609 = vmatpush.msra.mxu0 0.0
        %610 = vmatpush.msra.mxu0 0.0
        %611 = vmatpush.msra.mxu0 0.0
        %612 = vmatpush.msra.mxu0 0.0
        %613 = vmatpush.msra.mxu0 0.0
        %v614 = vand.u32 %v356, 4294901760
        %615 = vmatpush.msra.mxu0 %v614
        %v616 = vand.u32 %v355, 4294901760
        %617 = vmatpush.msra.mxu0 %v616
        %v618 = vand.u32 %v354, 4294901760
        %619 = vmatpush.msra.mxu0 %v618
        %v620 = vand.u32 %v353, 4294901760
        %621 = vmatpush.msra.mxu0 %v620
        %v622 = vand.u32 %v440, 4294901760
        %623 = vmatmul.f32.gmra.mxu0 %v622
        %v624 = vpop.f32.mrf.mxu0
        %v625 = vadd.f32 %v600, %v624
        %626 = vdwg.mxu0
        %s627 = scalar_lea.vmem %s310, %s320 [#allocation7]
        %vm628 = vcmask 9216
        %629 = vst.msk [vmem:[%s627] sm:$0x3] %vm628, %v625
        %v630 = vld [vmem:[%s3] sm:$0x3]
        %v631 = vsel %vm389, %v337, 0.0
        %v632 = vsel %vm389, %v341, 0.0
        %v633 = vadd.f32 %v631, %v632
        %v634 = vsel %vm389, %v345, 0.0
        %v635 = vadd.f32 %v633, %v634
        %v636 = vsel %vm389, %v349, 0.0
        %v637 = vadd.f32 %v635, %v636
        %v638 = vsel %vm389, %v338, 0.0
        %v639 = vsel %vm389, %v342, 0.0
        %v640 = vadd.f32 %v638, %v639
        %v641 = vsel %vm389, %v346, 0.0
        %v642 = vadd.f32 %v640, %v641
        %v643 = vsel %vm389, %v350, 0.0
        %v644 = vadd.f32 %v642, %v643
        %v645 = vsel %vm389, %v339, 0.0
        %v646 = vsel %vm389, %v343, 0.0
        %v647 = vadd.f32 %v645, %v646
        %v648 = vsel %vm389, %v347, 0.0
        %v649 = vadd.f32 %v647, %v648
        %v650 = vsel %vm389, %v351, 0.0
        %v651 = vadd.f32 %v649, %v650
        %v652 = vsel %vm389, %v340, 0.0
        %v653 = vsel %vm389, %v344, 0.0
        %v654 = vadd.f32 %v652, %v653
        %v655 = vsel %vm389, %v348, 0.0
        %v656 = vadd.f32 %v654, %v655
        %v657 = vsel %vm389, %v352, 0.0
        %v658 = vadd.f32 %v656, %v657
        %v659 = vsel %vm389, %v637, 0.0
        %v660 = vsel %vm389, %v644, 0.0
        %v661 = vadd.f32 %v659, %v660
        %v662 = vrot.slane %v661, 4
        %v663 = vadd.f32 %v661, %v662
        %v664 = vrot.slane %v663, 2
        %v665 = vadd.f32 %v663, %v664
        %v666 = vrot.slane %v665, 1
        %v667 = vadd.f32 %v665, %v666
        %v668 = vsel %vm389, %v651, 0.0
        %v669 = vsel %vm389, %v658, 0.0
        %v670 = vadd.f32 %v668, %v669
        %v671 = vrot.slane %v670, 4
        %v672 = vadd.f32 %v670, %v671
        %v673 = vrot.slane %v672, 2
        %v674 = vadd.f32 %v672, %v673
        %v675 = vrot.slane %v674, 1
        %v676 = vadd.f32 %v674, %v675
        %v679 = vsel %vm438, %v676, %v667
        %v680 = vsel %vm389, %v679, 0
        %682 = vmatpush.msra.mxu0 0.0
        %683 = vmatpush.msra.mxu0 0.0
        %684 = vmatpush.msra.mxu0 0.0
        %685 = vmatpush.msra.mxu0 0.0
        %686 = vmatpush.msra.mxu0 0.0
        %687 = vmatpush.msra.mxu0 0.0
        %688 = vmatpush.msra.mxu0 0.0
        %689 = vmatpush.msra.mxu0 0.0
        %690 = vmatpush.msra.mxu0 0.0
        %691 = vmatpush.msra.mxu0 0.0
        %692 = vmatpush.msra.mxu0 0.0
        %693 = vmatpush.msra.mxu0 0.0
        %v694 = vand.u32 %v356, 4294901760
        %695 = vmatpush.msra.mxu0 %v694
        %v696 = vand.u32 %v355, 4294901760
        %697 = vmatpush.msra.mxu0 %v696
        %v698 = vand.u32 %v354, 4294901760
        %699 = vmatpush.msra.mxu0 %v698
        %v700 = vand.u32 %v353, 4294901760
        %701 = vmatpush.msra.mxu0 %v700
        %v702 = vand.u32 %v680, 4294901760
        %v703 = vsub.f32 %v680, %v702
        %v704 = vand.u32 %v703, 4294901760
        %v705 = vsub.f32 %v703, %v704
        %v706 = vand.u32 %v705, 4294901760
        %707 = vmatmul.f32.gmra.mxu0 %v706
        %v708 = vpop.f32.mrf.mxu0
        %v709 = vadd.f32 0.0, %v708
        %710 = vdwg.mxu0
        %711 = vmatpush.msra.mxu0 0.0
        %712 = vmatpush.msra.mxu0 0.0
        %713 = vmatpush.msra.mxu0 0.0
        %714 = vmatpush.msra.mxu0 0.0
        %715 = vmatpush.msra.mxu0 0.0
        %716 = vmatpush.msra.mxu0 0.0
        %717 = vmatpush.msra.mxu0 0.0
        %718 = vmatpush.msra.mxu0 0.0
        %719 = vmatpush.msra.mxu0 0.0
        %720 = vmatpush.msra.mxu0 0.0
        %721 = vmatpush.msra.mxu0 0.0
        %722 = vmatpush.msra.mxu0 0.0
        %v723 = vand.u32 %v356, 4294901760
        %v724 = vsub.f32 %v356, %v723
        %v725 = vand.u32 %v724, 4294901760
        %v726 = vsub.f32 %v724, %v725
        %v727 = vand.u32 %v726, 4294901760
        %728 = vmatpush.msra.mxu0 %v727
        %v729 = vand.u32 %v355, 4294901760
        %v730 = vsub.f32 %v355, %v729
        %v731 = vand.u32 %v730, 4294901760
        %v732 = vsub.f32 %v730, %v731
        %v733 = vand.u32 %v732, 4294901760
        %734 = vmatpush.msra.mxu0 %v733
        %v735 = vand.u32 %v354, 4294901760
        %v736 = vsub.f32 %v354, %v735
        %v737 = vand.u32 %v736, 4294901760
        %v738 = vsub.f32 %v736, %v737
        %v739 = vand.u32 %v738, 4294901760
        %740 = vmatpush.msra.mxu0 %v739
        %v741 = vand.u32 %v353, 4294901760
        %v742 = vsub.f32 %v353, %v741
        %v743 = vand.u32 %v742, 4294901760
        %v744 = vsub.f32 %v742, %v743
        %v745 = vand.u32 %v744, 4294901760
        %746 = vmatpush.msra.mxu0 %v745
        %v747 = vand.u32 %v680, 4294901760
        %748 = vmatmul.f32.gmra.mxu0 %v747
        %v749 = vpop.f32.mrf.mxu0
        %v750 = vadd.f32 %v709, %v749
        %751 = vdwg.mxu0
        %752 = vmatpush.msra.mxu0 0.0
        %753 = vmatpush.msra.mxu0 0.0
        %754 = vmatpush.msra.mxu0 0.0
        %755 = vmatpush.msra.mxu0 0.0
        %756 = vmatpush.msra.mxu0 0.0
        %757 = vmatpush.msra.mxu0 0.0
        %758 = vmatpush.msra.mxu0 0.0
        %759 = vmatpush.msra.mxu0 0.0
        %760 = vmatpush.msra.mxu0 0.0
        %761 = vmatpush.msra.mxu0 0.0
        %762 = vmatpush.msra.mxu0 0.0
        %763 = vmatpush.msra.mxu0 0.0
        %v764 = vand.u32 %v356, 4294901760
        %v765 = vsub.f32 %v356, %v764
        %766 = vmatpush.msra.mxu0 %v765
        %v767 = vand.u32 %v355, 4294901760
        %v768 = vsub.f32 %v355, %v767
        %769 = vmatpush.msra.mxu0 %v768
        %v770 = vand.u32 %v354, 4294901760
        %v771 = vsub.f32 %v354, %v770
        %772 = vmatpush.msra.mxu0 %v771
        %v773 = vand.u32 %v353, 4294901760
        %v774 = vsub.f32 %v353, %v773
        %775 = vmatpush.msra.mxu0 %v774
        %v776 = vand.u32 %v680, 4294901760
        %v777 = vsub.f32 %v680, %v776
        %778 = vmatmul.f32.gmra.mxu0 %v777
        %v779 = vpop.f32.mrf.mxu0
        %v780 = vadd.f32 %v750, %v779
        %781 = vdwg.mxu0
        %782 = vmatpush.msra.mxu0 0.0
        %783 = vmatpush.msra.mxu0 0.0
        %784 = vmatpush.msra.mxu0 0.0
        %785 = vmatpush.msra.mxu0 0.0
        %786 = vmatpush.msra.mxu0 0.0
        %787 = vmatpush.msra.mxu0 0.0
        %788 = vmatpush.msra.mxu0 0.0
        %789 = vmatpush.msra.mxu0 0.0
        %790 = vmatpush.msra.mxu0 0.0
        %791 = vmatpush.msra.mxu0 0.0
        %792 = vmatpush.msra.mxu0 0.0
        %793 = vmatpush.msra.mxu0 0.0
        %v794 = vand.u32 %v356, 4294901760
        %795 = vmatpush.msra.mxu0 %v794
        %v796 = vand.u32 %v355, 4294901760
        %797 = vmatpush.msra.mxu0 %v796
        %v798 = vand.u32 %v354, 4294901760
        %799 = vmatpush.msra.mxu0 %v798
        %v800 = vand.u32 %v353, 4294901760
        %801 = vmatpush.msra.mxu0 %v800
        %v802 = vand.u32 %v680, 4294901760
        %v803 = vsub.f32 %v680, %v802
        %v804 = vand.u32 %v803, 4294901760
        %805 = vmatmul.f32.gmra.mxu0 %v804
        %v806 = vpop.f32.mrf.mxu0
        %v807 = vadd.f32 %v780, %v806
        %808 = vdwg.mxu0
        %809 = vmatpush.msra.mxu0 0.0
        %810 = vmatpush.msra.mxu0 0.0
        %811 = vmatpush.msra.mxu0 0.0
        %812 = vmatpush.msra.mxu0 0.0
        %813 = vmatpush.msra.mxu0 0.0
        %814 = vmatpush.msra.mxu0 0.0
        %815 = vmatpush.msra.mxu0 0.0
        %816 = vmatpush.msra.mxu0 0.0
        %817 = vmatpush.msra.mxu0 0.0
        %818 = vmatpush.msra.mxu0 0.0
        %819 = vmatpush.msra.mxu0 0.0
        %820 = vmatpush.msra.mxu0 0.0
        %v821 = vand.u32 %v356, 4294901760
        %v822 = vsub.f32 %v356, %v821
        %v823 = vand.u32 %v822, 4294901760
        %824 = vmatpush.msra.mxu0 %v823
        %v825 = vand.u32 %v355, 4294901760
        %v826 = vsub.f32 %v355, %v825
        %v827 = vand.u32 %v826, 4294901760
        %828 = vmatpush.msra.mxu0 %v827
        %v829 = vand.u32 %v354, 4294901760
        %v830 = vsub.f32 %v354, %v829
        %v831 = vand.u32 %v830, 4294901760
        %832 = vmatpush.msra.mxu0 %v831
        %v833 = vand.u32 %v353, 4294901760
        %v834 = vsub.f32 %v353, %v833
        %v835 = vand.u32 %v834, 4294901760
        %836 = vmatpush.msra.mxu0 %v835
        %v837 = vand.u32 %v680, 4294901760
        %838 = vmatmul.f32.gmra.mxu0 %v837
        %v839 = vpop.f32.mrf.mxu0
        %v840 = vadd.f32 %v807, %v839
        %841 = vdwg.mxu0
        %842 = vmatpush.msra.mxu0 0.0
        %843 = vmatpush.msra.mxu0 0.0
        %844 = vmatpush.msra.mxu0 0.0
        %845 = vmatpush.msra.mxu0 0.0
        %846 = vmatpush.msra.mxu0 0.0
        %847 = vmatpush.msra.mxu0 0.0
        %848 = vmatpush.msra.mxu0 0.0
        %849 = vmatpush.msra.mxu0 0.0
        %850 = vmatpush.msra.mxu0 0.0
        %851 = vmatpush.msra.mxu0 0.0
        %852 = vmatpush.msra.mxu0 0.0
        %853 = vmatpush.msra.mxu0 0.0
        %v854 = vand.u32 %v356, 4294901760
        %855 = vmatpush.msra.mxu0 %v854
        %v856 = vand.u32 %v355, 4294901760
        %857 = vmatpush.msra.mxu0 %v856
        %v858 = vand.u32 %v354, 4294901760
        %859 = vmatpush.msra.mxu0 %v858
        %v860 = vand.u32 %v353, 4294901760
        %861 = vmatpush.msra.mxu0 %v860
        %v862 = vand.u32 %v680, 4294901760
        %863 = vmatmul.f32.gmra.mxu0 %v862
        %v864 = vpop.f32.mrf.mxu0
        %v865 = vadd.f32 %v840, %v864
        %866 = vdwg.mxu0
        %v867 = vmul.f32 %v865, 0.0009765625
        %vm868 = vcmask 15360
        %v870 = vsel %vm868, %v867, 0
        %vm872 = vcmask 1041408
        %v874 = vsel %vm872, %v630, 0
        %876 = vmatpush.msra.mxu0 0.0
        %877 = vmatpush.msra.mxu0 0.0
        %878 = vmatpush.msra.mxu0 0.0
        %879 = vmatpush.msra.mxu0 0.0
        %880 = vmatpush.msra.mxu0 0.0
        %881 = vmatpush.msra.mxu0 0.0
        %882 = vmatpush.msra.mxu0 0.0
        %883 = vmatpush.msra.mxu0 0.0
        %884 = vmatpush.msra.mxu0 0.0
        %885 = vmatpush.msra.mxu0 0.0
        %886 = vmatpush.msra.mxu0 0.0
        %887 = vmatpush.msra.mxu0 0.0
        %888 = vmatpush.msra.mxu0 0.0
        %889 = vmatpush.msra.mxu0 0.0
        %890 = vmatpush.msra.mxu0 0.0
        %v891 = vand.u32 %v874, 4294901760
        %892 = vmatpush.msra.mxu0 %v891
        %v893 = vand.u32 %v870, 4294901760
        %v894 = vsub.f32 %v870, %v893
        %v895 = vand.u32 %v894, 4294901760
        %v896 = vsub.f32 %v894, %v895
        %v897 = vand.u32 %v896, 4294901760
        %898 = vmatmul.f32.gmra.mxu0 %v897
        %v899 = vpop.f32.mrf.mxu0
        %v900 = vadd.f32 0.0, %v899
        %901 = vdwg.mxu0
        %902 = vmatpush.msra.mxu0 0.0
        %903 = vmatpush.msra.mxu0 0.0
        %904 = vmatpush.msra.mxu0 0.0
        %905 = vmatpush.msra.mxu0 0.0
        %906 = vmatpush.msra.mxu0 0.0
        %907 = vmatpush.msra.mxu0 0.0
        %908 = vmatpush.msra.mxu0 0.0
        %909 = vmatpush.msra.mxu0 0.0
        %910 = vmatpush.msra.mxu0 0.0
        %911 = vmatpush.msra.mxu0 0.0
        %912 = vmatpush.msra.mxu0 0.0
        %913 = vmatpush.msra.mxu0 0.0
        %914 = vmatpush.msra.mxu0 0.0
        %915 = vmatpush.msra.mxu0 0.0
        %916 = vmatpush.msra.mxu0 0.0
        %v917 = vand.u32 %v874, 4294901760
        %v918 = vsub.f32 %v874, %v917
        %v919 = vand.u32 %v918, 4294901760
        %v920 = vsub.f32 %v918, %v919
        %v921 = vand.u32 %v920, 4294901760
        %922 = vmatpush.msra.mxu0 %v921
        %v923 = vand.u32 %v870, 4294901760
        %924 = vmatmul.f32.gmra.mxu0 %v923
        %v925 = vpop.f32.mrf.mxu0
        %v926 = vadd.f32 %v900, %v925
        %927 = vdwg.mxu0
        %928 = vmatpush.msra.mxu0 0.0
        %929 = vmatpush.msra.mxu0 0.0
        %930 = vmatpush.msra.mxu0 0.0
        %931 = vmatpush.msra.mxu0 0.0
        %932 = vmatpush.msra.mxu0 0.0
        %933 = vmatpush.msra.mxu0 0.0
        %934 = vmatpush.msra.mxu0 0.0
        %935 = vmatpush.msra.mxu0 0.0
        %936 = vmatpush.msra.mxu0 0.0
        %937 = vmatpush.msra.mxu0 0.0
        %938 = vmatpush.msra.mxu0 0.0
        %939 = vmatpush.msra.mxu0 0.0
        %940 = vmatpush.msra.mxu0 0.0
        %941 = vmatpush.msra.mxu0 0.0
        %942 = vmatpush.msra.mxu0 0.0
        %v943 = vand.u32 %v874, 4294901760
        %v944 = vsub.f32 %v874, %v943
        %945 = vmatpush.msra.mxu0 %v944
        %v946 = vand.u32 %v870, 4294901760
        %v947 = vsub.f32 %v870, %v946
        %948 = vmatmul.f32.gmra.mxu0 %v947
        %v949 = vpop.f32.mrf.mxu0
        %v950 = vadd.f32 %v926, %v949
        %951 = vdwg.mxu0
        %952 = vmatpush.msra.mxu0 0.0
        %953 = vmatpush.msra.mxu0 0.0
        %954 = vmatpush.msra.mxu0 0.0
        %955 = vmatpush.msra.mxu0 0.0
        %956 = vmatpush.msra.mxu0 0.0
        %957 = vmatpush.msra.mxu0 0.0
        %958 = vmatpush.msra.mxu0 0.0
        %959 = vmatpush.msra.mxu0 0.0
        %960 = vmatpush.msra.mxu0 0.0
        %961 = vmatpush.msra.mxu0 0.0
        %962 = vmatpush.msra.mxu0 0.0
        %963 = vmatpush.msra.mxu0 0.0
        %964 = vmatpush.msra.mxu0 0.0
        %965 = vmatpush.msra.mxu0 0.0
        %966 = vmatpush.msra.mxu0 0.0
        %v967 = vand.u32 %v874, 4294901760
        %968 = vmatpush.msra.mxu0 %v967
        %v969 = vand.u32 %v870, 4294901760
        %v970 = vsub.f32 %v870, %v969
        %v971 = vand.u32 %v970, 4294901760
        %972 = vmatmul.f32.gmra.mxu0 %v971
        %v973 = vpop.f32.mrf.mxu0
        %v974 = vadd.f32 %v950, %v973
        %975 = vdwg.mxu0
        %976 = vmatpush.msra.mxu0 0.0
        %977 = vmatpush.msra.mxu0 0.0
        %978 = vmatpush.msra.mxu0 0.0
        %979 = vmatpush.msra.mxu0 0.0
        %980 = vmatpush.msra.mxu0 0.0
        %981 = vmatpush.msra.mxu0 0.0
        %982 = vmatpush.msra.mxu0 0.0
        %983 = vmatpush.msra.mxu0 0.0
        %984 = vmatpush.msra.mxu0 0.0
        %985 = vmatpush.msra.mxu0 0.0
        %986 = vmatpush.msra.mxu0 0.0
        %987 = vmatpush.msra.mxu0 0.0
        %988 = vmatpush.msra.mxu0 0.0
        %989 = vmatpush.msra.mxu0 0.0
        %990 = vmatpush.msra.mxu0 0.0
        %v991 = vand.u32 %v874, 4294901760
        %v992 = vsub.f32 %v874, %v991
        %v993 = vand.u32 %v992, 4294901760
        %994 = vmatpush.msra.mxu0 %v993
        %v995 = vand.u32 %v870, 4294901760
        %996 = vmatmul.f32.gmra.mxu0 %v995
        %v997 = vpop.f32.mrf.mxu0
        %v998 = vadd.f32 %v974, %v997
        %999 = vdwg.mxu0
        %1000 = vmatpush.msra.mxu0 0.0
        %1001 = vmatpush.msra.mxu0 0.0
        %1002 = vmatpush.msra.mxu0 0.0
        %1003 = vmatpush.msra.mxu0 0.0
        %1004 = vmatpush.msra.mxu0 0.0
        %1005 = vmatpush.msra.mxu0 0.0
        %1006 = vmatpush.msra.mxu0 0.0
        %1007 = vmatpush.msra.mxu0 0.0
        %1008 = vmatpush.msra.mxu0 0.0
        %1009 = vmatpush.msra.mxu0 0.0
        %1010 = vmatpush.msra.mxu0 0.0
        %1011 = vmatpush.msra.mxu0 0.0
        %1012 = vmatpush.msra.mxu0 0.0
        %1013 = vmatpush.msra.mxu0 0.0
        %1014 = vmatpush.msra.mxu0 0.0
        %v1015 = vand.u32 %v874, 4294901760
        %1016 = vmatpush.msra.mxu0 %v1015
        %v1017 = vand.u32 %v870, 4294901760
        %1018 = vmatmul.f32.gmra.mxu0 %v1017
        %v1019 = vpop.f32.mrf.mxu0
        %v1020 = vadd.f32 %v998, %v1019
        %1021 = vdwg.mxu0
        %v1023 = vrot.slane %v1020, 1
        %v1024 = vperm.slane %v1020, 0
        %v1025 = vperm.slane %v1023, 0
        %v1028 = vsub.f32 %v337, %v1024
        %v1029 = vsub.f32 %v338, %v1024
        %v1030 = vsub.f32 %v339, %v1025
        %v1031 = vsub.f32 %v340, %v1025
        %v1032 = vsub.f32 %v341, %v1024
        %v1033 = vsub.f32 %v342, %v1024
        %v1034 = vsub.f32 %v343, %v1025
        %v1035 = vsub.f32 %v344, %v1025
        %v1036 = vsub.f32 %v345, %v1024
        %v1037 = vsub.f32 %v346, %v1024
        %v1038 = vsub.f32 %v347, %v1025
        %v1039 = vsub.f32 %v348, %v1025
        %v1040 = vsub.f32 %v349, %v1024
        %v1041 = vsub.f32 %v350, %v1024
        %v1042 = vsub.f32 %v351, %v1025
        %v1043 = vsub.f32 %v352, %v1025
        %v1044 = vmul.f32 %v1028, %v1028
        %v1045 = vmul.f32 %v1029, %v1029
        %v1046 = vmul.f32 %v1030, %v1030
        %v1047 = vmul.f32 %v1031, %v1031
        %v1048 = vmul.f32 %v1032, %v1032
        %v1049 = vmul.f32 %v1033, %v1033
        %v1050 = vmul.f32 %v1034, %v1034
        %v1051 = vmul.f32 %v1035, %v1035
        %v1052 = vmul.f32 %v1036, %v1036
        %v1053 = vmul.f32 %v1037, %v1037
        %v1054 = vmul.f32 %v1038, %v1038
        %v1055 = vmul.f32 %v1039, %v1039
        %v1056 = vmul.f32 %v1040, %v1040
        %v1057 = vmul.f32 %v1041, %v1041
        %v1058 = vmul.f32 %v1042, %v1042
        %v1059 = vmul.f32 %v1043, %v1043
        %v1060 = vsel %vm389, %v1044, 0.0
        %v1061 = vsel %vm389, %v1048, 0.0
        %v1062 = vadd.f32 %v1060, %v1061
        %v1063 = vsel %vm389, %v1052, 0.0
        %v1064 = vadd.f32 %v1062, %v1063
        %v1065 = vsel %vm389, %v1056, 0.0
        %v1066 = vadd.f32 %v1064, %v1065
        %v1067 = vsel %vm389, %v1045, 0.0
        %v1068 = vsel %vm389, %v1049, 0.0
        %v1069 = vadd.f32 %v1067, %v1068
        %v1070 = vsel %vm389, %v1053, 0.0
        %v1071 = vadd.f32 %v1069, %v1070
        %v1072 = vsel %vm389, %v1057, 0.0
        %v1073 = vadd.f32 %v1071, %v1072
        %v1074 = vsel %vm389, %v1046, 0.0
        %v1075 = vsel %vm389, %v1050, 0.0
        %v1076 = vadd.f32 %v1074, %v1075
        %v1077 = vsel %vm389, %v1054, 0.0
        %v1078 = vadd.f32 %v1076, %v1077
        %v1079 = vsel %vm389, %v1058, 0.0
        %v1080 = vadd.f32 %v1078, %v1079
        %v1081 = vsel %vm389, %v1047, 0.0
        %v1082 = vsel %vm389, %v1051, 0.0
        %v1083 = vadd.f32 %v1081, %v1082
        %v1084 = vsel %vm389, %v1055, 0.0
        %v1085 = vadd.f32 %v1083, %v1084
        %v1086 = vsel %vm389, %v1059, 0.0
        %v1087 = vadd.f32 %v1085, %v1086
        %v1088 = vsel %vm389, %v1066, 0.0
        %v1089 = vsel %vm389, %v1073, 0.0
        %v1090 = vadd.f32 %v1088, %v1089
        %v1091 = vrot.slane %v1090, 4
        %v1092 = vadd.f32 %v1090, %v1091
        %v1093 = vrot.slane %v1092, 2
        %v1094 = vadd.f32 %v1092, %v1093
        %v1095 = vrot.slane %v1094, 1
        %v1096 = vadd.f32 %v1094, %v1095
        %v1097 = vsel %vm389, %v1080, 0.0
        %v1098 = vsel %vm389, %v1087, 0.0
        %v1099 = vadd.f32 %v1097, %v1098
        %v1100 = vrot.slane %v1099, 4
        %v1101 = vadd.f32 %v1099, %v1100
        %v1102 = vrot.slane %v1101, 2
        %v1103 = vadd.f32 %v1101, %v1102
        %v1104 = vrot.slane %v1103, 1
        %v1105 = vadd.f32 %v1103, %v1104
        %v1108 = vsel %vm438, %v1105, %v1096
        %v1109 = vsel %vm389, %v1108, 0
        %1111 = vmatpush.msra.mxu0 0.0
        %1112 = vmatpush.msra.mxu0 0.0
        %1113 = vmatpush.msra.mxu0 0.0
        %1114 = vmatpush.msra.mxu0 0.0
        %1115 = vmatpush.msra.mxu0 0.0
        %1116 = vmatpush.msra.mxu0 0.0
        %1117 = vmatpush.msra.mxu0 0.0
        %1118 = vmatpush.msra.mxu0 0.0
        %1119 = vmatpush.msra.mxu0 0.0
        %1120 = vmatpush.msra.mxu0 0.0
        %1121 = vmatpush.msra.mxu0 0.0
        %1122 = vmatpush.msra.mxu0 0.0
        %v1123 = vand.u32 %v356, 4294901760
        %1124 = vmatpush.msra.mxu0 %v1123
        %v1125 = vand.u32 %v355, 4294901760
        %1126 = vmatpush.msra.mxu0 %v1125
        %v1127 = vand.u32 %v354, 4294901760
        %1128 = vmatpush.msra.mxu0 %v1127
        %v1129 = vand.u32 %v353, 4294901760
        %1130 = vmatpush.msra.mxu0 %v1129
        %v1131 = vand.u32 %v1109, 4294901760
        %v1132 = vsub.f32 %v1109, %v1131
        %v1133 = vand.u32 %v1132, 4294901760
        %v1134 = vsub.f32 %v1132, %v1133
        %v1135 = vand.u32 %v1134, 4294901760
        %1136 = vmatmul.f32.gmra.mxu0 %v1135
        %v1137 = vpop.f32.mrf.mxu0
        %v1138 = vadd.f32 0.0, %v1137
        %1139 = vdwg.mxu0
        %1140 = vmatpush.msra.mxu0 0.0
        %1141 = vmatpush.msra.mxu0 0.0
        %1142 = vmatpush.msra.mxu0 0.0
        %1143 = vmatpush.msra.mxu0 0.0
        %1144 = vmatpush.msra.mxu0 0.0
        %1145 = vmatpush.msra.mxu0 0.0
        %1146 = vmatpush.msra.mxu0 0.0
        %1147 = vmatpush.msra.mxu0 0.0
        %1148 = vmatpush.msra.mxu0 0.0
        %1149 = vmatpush.msra.mxu0 0.0
        %1150 = vmatpush.msra.mxu0 0.0
        %1151 = vmatpush.msra.mxu0 0.0
        %v1152 = vand.u32 %v356, 4294901760
        %v1153 = vsub.f32 %v356, %v1152
        %v1154 = vand.u32 %v1153, 4294901760
        %v1155 = vsub.f32 %v1153, %v1154
        %v1156 = vand.u32 %v1155, 4294901760
        %1157 = vmatpush.msra.mxu0 %v1156
        %v1158 = vand.u32 %v355, 4294901760
        %v1159 = vsub.f32 %v355, %v1158
        %v1160 = vand.u32 %v1159, 4294901760
        %v1161 = vsub.f32 %v1159, %v1160
        %v1162 = vand.u32 %v1161, 4294901760
        %1163 = vmatpush.msra.mxu0 %v1162
        %v1164 = vand.u32 %v354, 4294901760
        %v1165 = vsub.f32 %v354, %v1164
        %v1166 = vand.u32 %v1165, 4294901760
        %v1167 = vsub.f32 %v1165, %v1166
        %v1168 = vand.u32 %v1167, 4294901760
        %1169 = vmatpush.msra.mxu0 %v1168
        %v1170 = vand.u32 %v353, 4294901760
        %v1171 = vsub.f32 %v353, %v1170
        %v1172 = vand.u32 %v1171, 4294901760
        %v1173 = vsub.f32 %v1171, %v1172
        %v1174 = vand.u32 %v1173, 4294901760
        %1175 = vmatpush.msra.mxu0 %v1174
        %v1176 = vand.u32 %v1109, 4294901760
        %1177 = vmatmul.f32.gmra.mxu0 %v1176
        %v1178 = vpop.f32.mrf.mxu0
        %v1179 = vadd.f32 %v1138, %v1178
        %1180 = vdwg.mxu0
        %1181 = vmatpush.msra.mxu0 0.0
        %1182 = vmatpush.msra.mxu0 0.0
        %1183 = vmatpush.msra.mxu0 0.0
        %1184 = vmatpush.msra.mxu0 0.0
        %1185 = vmatpush.msra.mxu0 0.0
        %1186 = vmatpush.msra.mxu0 0.0
        %1187 = vmatpush.msra.mxu0 0.0
        %1188 = vmatpush.msra.mxu0 0.0
        %1189 = vmatpush.msra.mxu0 0.0
        %1190 = vmatpush.msra.mxu0 0.0
        %1191 = vmatpush.msra.mxu0 0.0
        %1192 = vmatpush.msra.mxu0 0.0
        %v1193 = vand.u32 %v356, 4294901760
        %v1194 = vsub.f32 %v356, %v1193
        %1195 = vmatpush.msra.mxu0 %v1194
        %v1196 = vand.u32 %v355, 4294901760
        %v1197 = vsub.f32 %v355, %v1196
        %1198 = vmatpush.msra.mxu0 %v1197
        %v1199 = vand.u32 %v354, 4294901760
        %v1200 = vsub.f32 %v354, %v1199
        %1201 = vmatpush.msra.mxu0 %v1200
        %v1202 = vand.u32 %v353, 4294901760
        %v1203 = vsub.f32 %v353, %v1202
        %1204 = vmatpush.msra.mxu0 %v1203
        %v1205 = vand.u32 %v1109, 4294901760
        %v1206 = vsub.f32 %v1109, %v1205
        %1207 = vmatmul.f32.gmra.mxu0 %v1206
        %v1208 = vpop.f32.mrf.mxu0
        %v1209 = vadd.f32 %v1179, %v1208
        %1210 = vdwg.mxu0
        %1211 = vmatpush.msra.mxu0 0.0
        %1212 = vmatpush.msra.mxu0 0.0
        %1213 = vmatpush.msra.mxu0 0.0
        %1214 = vmatpush.msra.mxu0 0.0
        %1215 = vmatpush.msra.mxu0 0.0
        %1216 = vmatpush.msra.mxu0 0.0
        %1217 = vmatpush.msra.mxu0 0.0
        %1218 = vmatpush.msra.mxu0 0.0
        %1219 = vmatpush.msra.mxu0 0.0
        %1220 = vmatpush.msra.mxu0 0.0
        %1221 = vmatpush.msra.mxu0 0.0
        %1222 = vmatpush.msra.mxu0 0.0
        %v1223 = vand.u32 %v356, 4294901760
        %1224 = vmatpush.msra.mxu0 %v1223
        %v1225 = vand.u32 %v355, 4294901760
        %1226 = vmatpush.msra.mxu0 %v1225
        %v1227 = vand.u32 %v354, 4294901760
        %1228 = vmatpush.msra.mxu0 %v1227
        %v1229 = vand.u32 %v353, 4294901760
        %1230 = vmatpush.msra.mxu0 %v1229
        %v1231 = vand.u32 %v1109, 4294901760
        %v1232 = vsub.f32 %v1109, %v1231
        %v1233 = vand.u32 %v1232, 4294901760
        %1234 = vmatmul.f32.gmra.mxu0 %v1233
        %v1235 = vpop.f32.mrf.mxu0
        %v1236 = vadd.f32 %v1209, %v1235
        %1237 = vdwg.mxu0
        %1238 = vmatpush.msra.mxu0 0.0
        %1239 = vmatpush.msra.mxu0 0.0
        %1240 = vmatpush.msra.mxu0 0.0
        %1241 = vmatpush.msra.mxu0 0.0
        %1242 = vmatpush.msra.mxu0 0.0
        %1243 = vmatpush.msra.mxu0 0.0
        %1244 = vmatpush.msra.mxu0 0.0
        %1245 = vmatpush.msra.mxu0 0.0
        %1246 = vmatpush.msra.mxu0 0.0
        %1247 = vmatpush.msra.mxu0 0.0
        %1248 = vmatpush.msra.mxu0 0.0
        %1249 = vmatpush.msra.mxu0 0.0
        %v1250 = vand.u32 %v356, 4294901760
        %v1251 = vsub.f32 %v356, %v1250
        %v1252 = vand.u32 %v1251, 4294901760
        %1253 = vmatpush.msra.mxu0 %v1252
        %v1254 = vand.u32 %v355, 4294901760
        %v1255 = vsub.f32 %v355, %v1254
        %v1256 = vand.u32 %v1255, 4294901760
        %1257 = vmatpush.msra.mxu0 %v1256
        %v1258 = vand.u32 %v354, 4294901760
        %v1259 = vsub.f32 %v354, %v1258
        %v1260 = vand.u32 %v1259, 4294901760
        %1261 = vmatpush.msra.mxu0 %v1260
        %v1262 = vand.u32 %v353, 4294901760
        %v1263 = vsub.f32 %v353, %v1262
        %v1264 = vand.u32 %v1263, 4294901760
        %1265 = vmatpush.msra.mxu0 %v1264
        %v1266 = vand.u32 %v1109, 4294901760
        %1267 = vmatmul.f32.gmra.mxu0 %v1266
        %v1268 = vpop.f32.mrf.mxu0
        %v1269 = vadd.f32 %v1236, %v1268
        %1270 = vdwg.mxu0
        %1271 = vmatpush.msra.mxu0 0.0
        %1272 = vmatpush.msra.mxu0 0.0
        %1273 = vmatpush.msra.mxu0 0.0
        %1274 = vmatpush.msra.mxu0 0.0
        %1275 = vmatpush.msra.mxu0 0.0
        %1276 = vmatpush.msra.mxu0 0.0
        %1277 = vmatpush.msra.mxu0 0.0
        %1278 = vmatpush.msra.mxu0 0.0
        %1279 = vmatpush.msra.mxu0 0.0
        %1280 = vmatpush.msra.mxu0 0.0
        %1281 = vmatpush.msra.mxu0 0.0
        %1282 = vmatpush.msra.mxu0 0.0
        %v1283 = vand.u32 %v356, 4294901760
        %1284 = vmatpush.msra.mxu0 %v1283
        %v1285 = vand.u32 %v355, 4294901760
        %1286 = vmatpush.msra.mxu0 %v1285
        %v1287 = vand.u32 %v354, 4294901760
        %1288 = vmatpush.msra.mxu0 %v1287
        %v1289 = vand.u32 %v353, 4294901760
        %1290 = vmatpush.msra.mxu0 %v1289
        %v1291 = vand.u32 %v1109, 4294901760
        %1292 = vmatmul.f32.gmra.mxu0 %v1291
        %v1293 = vpop.f32.mrf.mxu0
        %v1294 = vadd.f32 %v1269, %v1293
        %1295 = vdwg.mxu0
        %v1296 = vmul.f32 %v1294, 0.0009775171
        %v1297 = vadd.f32 %v1296, 1e-06
        %v1298 = vrsqrt.pop %v1297
        %v1299 = vmul.f32 %v1298, %v1297
        %v1300 = vmul.f32 %v1299, %v1298
        %v1301 = vmul.f32 0.5, %v1300
        %v1302 = vsub.f32 1.5, %v1301
        %v1303 = vmul.f32 %v1298, %v1302
        %vm1304 = vweird.f32 %v1297
        %vm1305 = vweird.f32 %v1298
        %vm1306 = vmor %vm1304, %vm1305
        %v1307 = vsel %vm1306, %v1298, %v1303
        %v1309 = vsel %vm868, %v1307, 0
        %1311 = vmatpush.msra.mxu0 0.0
        %1312 = vmatpush.msra.mxu0 0.0
        %1313 = vmatpush.msra.mxu0 0.0
        %1314 = vmatpush.msra.mxu0 0.0
        %1315 = vmatpush.msra.mxu0 0.0
        %1316 = vmatpush.msra.mxu0 0.0
        %1317 = vmatpush.msra.mxu0 0.0
        %1318 = vmatpush.msra.mxu0 0.0
        %1319 = vmatpush.msra.mxu0 0.0
        %1320 = vmatpush.msra.mxu0 0.0
        %1321 = vmatpush.msra.mxu0 0.0
        %1322 = vmatpush.msra.mxu0 0.0
        %1323 = vmatpush.msra.mxu0 0.0
        %1324 = vmatpush.msra.mxu0 0.0
        %1325 = vmatpush.msra.mxu0 0.0
        %v1326 = vand.u32 %v874, 4294901760
        %1327 = vmatpush.msra.mxu0 %v1326
        %v1328 = vand.u32 %v1309, 4294901760
        %v1329 = vsub.f32 %v1309, %v1328
        %v1330 = vand.u32 %v1329, 4294901760
        %v1331 = vsub.f32 %v1329, %v1330
        %v1332 = vand.u32 %v1331, 4294901760
        %1333 = vmatmul.f32.gmra.mxu0 %v1332
        %v1334 = vpop.f32.mrf.mxu0
        %v1335 = vadd.f32 0.0, %v1334
        %1336 = vdwg.mxu0
        %1337 = vmatpush.msra.mxu0 0.0
        %1338 = vmatpush.msra.mxu0 0.0
        %1339 = vmatpush.msra.mxu0 0.0
        %1340 = vmatpush.msra.mxu0 0.0
        %1341 = vmatpush.msra.mxu0 0.0
        %1342 = vmatpush.msra.mxu0 0.0
        %1343 = vmatpush.msra.mxu0 0.0
        %1344 = vmatpush.msra.mxu0 0.0
        %1345 = vmatpush.msra.mxu0 0.0
        %1346 = vmatpush.msra.mxu0 0.0
        %1347 = vmatpush.msra.mxu0 0.0
        %1348 = vmatpush.msra.mxu0 0.0
        %1349 = vmatpush.msra.mxu0 0.0
        %1350 = vmatpush.msra.mxu0 0.0
        %1351 = vmatpush.msra.mxu0 0.0
        %v1352 = vand.u32 %v874, 4294901760
        %v1353 = vsub.f32 %v874, %v1352
        %v1354 = vand.u32 %v1353, 4294901760
        %v1355 = vsub.f32 %v1353, %v1354
        %v1356 = vand.u32 %v1355, 4294901760
        %1357 = vmatpush.msra.mxu0 %v1356
        %v1358 = vand.u32 %v1309, 4294901760
        %1359 = vmatmul.f32.gmra.mxu0 %v1358
        %v1360 = vpop.f32.mrf.mxu0
        %v1361 = vadd.f32 %v1335, %v1360
        %1362 = vdwg.mxu0
        %1363 = vmatpush.msra.mxu0 0.0
        %1364 = vmatpush.msra.mxu0 0.0
        %1365 = vmatpush.msra.mxu0 0.0
        %1366 = vmatpush.msra.mxu0 0.0
        %1367 = vmatpush.msra.mxu0 0.0
        %1368 = vmatpush.msra.mxu0 0.0
        %1369 = vmatpush.msra.mxu0 0.0
        %1370 = vmatpush.msra.mxu0 0.0
        %1371 = vmatpush.msra.mxu0 0.0
        %1372 = vmatpush.msra.mxu0 0.0
        %1373 = vmatpush.msra.mxu0 0.0
        %1374 = vmatpush.msra.mxu0 0.0
        %1375 = vmatpush.msra.mxu0 0.0
        %1376 = vmatpush.msra.mxu0 0.0
        %1377 = vmatpush.msra.mxu0 0.0
        %v1378 = vand.u32 %v874, 4294901760
        %v1379 = vsub.f32 %v874, %v1378
        %1380 = vmatpush.msra.mxu0 %v1379
        %v1381 = vand.u32 %v1309, 4294901760
        %v1382 = vsub.f32 %v1309, %v1381
        %1383 = vmatmul.f32.gmra.mxu0 %v1382
        %v1384 = vpop.f32.mrf.mxu0
        %v1385 = vadd.f32 %v1361, %v1384
        %1386 = vdwg.mxu0
        %1387 = vmatpush.msra.mxu0 0.0
        %1388 = vmatpush.msra.mxu0 0.0
        %1389 = vmatpush.msra.mxu0 0.0
        %1390 = vmatpush.msra.mxu0 0.0
        %1391 = vmatpush.msra.mxu0 0.0
        %1392 = vmatpush.msra.mxu0 0.0
        %1393 = vmatpush.msra.mxu0 0.0
        %1394 = vmatpush.msra.mxu0 0.0
        %1395 = vmatpush.msra.mxu0 0.0
        %1396 = vmatpush.msra.mxu0 0.0
        %1397 = vmatpush.msra.mxu0 0.0
        %1398 = vmatpush.msra.mxu0 0.0
        %1399 = vmatpush.msra.mxu0 0.0
        %1400 = vmatpush.msra.mxu0 0.0
        %1401 = vmatpush.msra.mxu0 0.0
        %v1402 = vand.u32 %v874, 4294901760
        %1403 = vmatpush.msra.mxu0 %v1402
        %v1404 = vand.u32 %v1309, 4294901760
        %v1405 = vsub.f32 %v1309, %v1404
        %v1406 = vand.u32 %v1405, 4294901760
        %1407 = vmatmul.f32.gmra.mxu0 %v1406
        %v1408 = vpop.f32.mrf.mxu0
        %v1409 = vadd.f32 %v1385, %v1408
        %1410 = vdwg.mxu0
        %1411 = vmatpush.msra.mxu0 0.0
        %1412 = vmatpush.msra.mxu0 0.0
        %1413 = vmatpush.msra.mxu0 0.0
        %1414 = vmatpush.msra.mxu0 0.0
        %1415 = vmatpush.msra.mxu0 0.0
        %1416 = vmatpush.msra.mxu0 0.0
        %1417 = vmatpush.msra.mxu0 0.0
        %1418 = vmatpush.msra.mxu0 0.0
        %1419 = vmatpush.msra.mxu0 0.0
        %1420 = vmatpush.msra.mxu0 0.0
        %1421 = vmatpush.msra.mxu0 0.0
        %1422 = vmatpush.msra.mxu0 0.0
        %1423 = vmatpush.msra.mxu0 0.0
        %1424 = vmatpush.msra.mxu0 0.0
        %1425 = vmatpush.msra.mxu0 0.0
        %v1426 = vand.u32 %v874, 4294901760
        %v1427 = vsub.f32 %v874, %v1426
        %v1428 = vand.u32 %v1427, 4294901760
        %1429 = vmatpush.msra.mxu0 %v1428
        %v1430 = vand.u32 %v1309, 4294901760
        %1431 = vmatmul.f32.gmra.mxu0 %v1430
        %v1432 = vpop.f32.mrf.mxu0
        %v1433 = vadd.f32 %v1409, %v1432
        %1434 = vdwg.mxu0
        %1435 = vmatpush.msra.mxu0 0.0
        %1436 = vmatpush.msra.mxu0 0.0
        %1437 = vmatpush.msra.mxu0 0.0
        %1438 = vmatpush.msra.mxu0 0.0
        %1439 = vmatpush.msra.mxu0 0.0
        %1440 = vmatpush.msra.mxu0 0.0
        %1441 = vmatpush.msra.mxu0 0.0
        %1442 = vmatpush.msra.mxu0 0.0
        %1443 = vmatpush.msra.mxu0 0.0
        %1444 = vmatpush.msra.mxu0 0.0
        %1445 = vmatpush.msra.mxu0 0.0
        %1446 = vmatpush.msra.mxu0 0.0
        %1447 = vmatpush.msra.mxu0 0.0
        %1448 = vmatpush.msra.mxu0 0.0
        %1449 = vmatpush.msra.mxu0 0.0
        %v1450 = vand.u32 %v874, 4294901760
        %1451 = vmatpush.msra.mxu0 %v1450
        %v1452 = vand.u32 %v1309, 4294901760
        %1453 = vmatmul.f32.gmra.mxu0 %v1452
        %v1454 = vpop.f32.mrf.mxu0
        %v1455 = vadd.f32 %v1433, %v1454
        %1456 = vdwg.mxu0
        %v1458 = vrot.slane %v1455, 1
        %v1459 = vperm.slane %v1455, 0
        %v1460 = vperm.slane %v1458, 0
        %v1463 = vmul.f32 %v1028, %v1459
        %v1464 = vmul.f32 %v1029, %v1459
        %v1465 = vmul.f32 %v1030, %v1460
        %v1466 = vmul.f32 %v1031, %v1460
        %v1467 = vmul.f32 %v1032, %v1459
        %v1468 = vmul.f32 %v1033, %v1459
        %v1469 = vmul.f32 %v1034, %v1460
        %v1470 = vmul.f32 %v1035, %v1460
        %v1471 = vmul.f32 %v1036, %v1459
        %v1472 = vmul.f32 %v1037, %v1459
        %v1473 = vmul.f32 %v1038, %v1460
        %v1474 = vmul.f32 %v1039, %v1460
        %v1475 = vmul.f32 %v1040, %v1459
        %v1476 = vmul.f32 %v1041, %v1459
        %v1477 = vmul.f32 %v1042, %v1460
        %v1478 = vmul.f32 %v1043, %v1460
        %v1479 = vsub.f32 %v321, %v1463
        %v1480 = vsub.f32 %v322, %v1464
        %v1481 = vsub.f32 %v323, %v1465
        %v1482 = vsub.f32 %v324, %v1466
        %v1483 = vsub.f32 %v325, %v1467
        %v1484 = vsub.f32 %v326, %v1468
        %v1485 = vsub.f32 %v327, %v1469
        %v1486 = vsub.f32 %v328, %v1470
        %v1487 = vsub.f32 %v329, %v1471
        %v1488 = vsub.f32 %v330, %v1472
        %v1489 = vsub.f32 %v331, %v1473
        %v1490 = vsub.f32 %v332, %v1474
        %v1491 = vsub.f32 %v333, %v1475
        %v1492 = vsub.f32 %v334, %v1476
        %v1493 = vsub.f32 %v335, %v1477
        %v1494 = vsub.f32 %v336, %v1478
        %v1495 = vmul.f32 %v1479, %v1479
        %v1496 = vmul.f32 %v1480, %v1480
        %v1497 = vmul.f32 %v1481, %v1481
        %v1498 = vmul.f32 %v1482, %v1482
        %v1499 = vmul.f32 %v1483, %v1483
        %v1500 = vmul.f32 %v1484, %v1484
        %v1501 = vmul.f32 %v1485, %v1485
        %v1502 = vmul.f32 %v1486, %v1486
        %v1503 = vmul.f32 %v1487, %v1487
        %v1504 = vmul.f32 %v1488, %v1488
        %v1505 = vmul.f32 %v1489, %v1489
        %v1506 = vmul.f32 %v1490, %v1490
        %v1507 = vmul.f32 %v1491, %v1491
        %v1508 = vmul.f32 %v1492, %v1492
        %v1509 = vmul.f32 %v1493, %v1493
        %v1510 = vmul.f32 %v1494, %v1494
        %v1511 = vsel %vm389, %v1495, 0.0
        %v1512 = vsel %vm389, %v1499, 0.0
        %v1513 = vadd.f32 %v1511, %v1512
        %v1514 = vsel %vm389, %v1503, 0.0
        %v1515 = vadd.f32 %v1513, %v1514
        %v1516 = vsel %vm389, %v1507, 0.0
        %v1517 = vadd.f32 %v1515, %v1516
        %v1518 = vsel %vm389, %v1496, 0.0
        %v1519 = vsel %vm389, %v1500, 0.0
        %v1520 = vadd.f32 %v1518, %v1519
        %v1521 = vsel %vm389, %v1504, 0.0
        %v1522 = vadd.f32 %v1520, %v1521
        %v1523 = vsel %vm389, %v1508, 0.0
        %v1524 = vadd.f32 %v1522, %v1523
        %v1525 = vsel %vm389, %v1497, 0.0
        %v1526 = vsel %vm389, %v1501, 0.0
        %v1527 = vadd.f32 %v1525, %v1526
        %v1528 = vsel %vm389, %v1505, 0.0
        %v1529 = vadd.f32 %v1527, %v1528
        %v1530 = vsel %vm389, %v1509, 0.0
        %v1531 = vadd.f32 %v1529, %v1530
        %v1532 = vsel %vm389, %v1498, 0.0
        %v1533 = vsel %vm389, %v1502, 0.0
        %v1534 = vadd.f32 %v1532, %v1533
        %v1535 = vsel %vm389, %v1506, 0.0
        %v1536 = vadd.f32 %v1534, %v1535
        %v1537 = vsel %vm389, %v1510, 0.0
        %v1538 = vadd.f32 %v1536, %v1537
        %v1539 = vsel %vm389, %v1517, 0.0
        %v1540 = vsel %vm389, %v1524, 0.0
        %v1541 = vadd.f32 %v1539, %v1540
        %v1542 = vrot.slane %v1541, 4
        %v1543 = vadd.f32 %v1541, %v1542
        %v1544 = vrot.slane %v1543, 2
        %v1545 = vadd.f32 %v1543, %v1544
        %v1546 = vrot.slane %v1545, 1
        %v1547 = vadd.f32 %v1545, %v1546
        %v1548 = vsel %vm389, %v1531, 0.0
        %v1549 = vsel %vm389, %v1538, 0.0
        %v1550 = vadd.f32 %v1548, %v1549
        %v1551 = vrot.slane %v1550, 4
        %v1552 = vadd.f32 %v1550, %v1551
        %v1553 = vrot.slane %v1552, 2
        %v1554 = vadd.f32 %v1552, %v1553
        %v1555 = vrot.slane %v1554, 1
        %v1556 = vadd.f32 %v1554, %v1555
        %v1559 = vsel %vm438, %v1556, %v1547
        %v1560 = vsel %vm389, %v1559, 0
        %1562 = vmatpush.msra.mxu0 0.0
        %1563 = vmatpush.msra.mxu0 0.0
        %1564 = vmatpush.msra.mxu0 0.0
        %1565 = vmatpush.msra.mxu0 0.0
        %1566 = vmatpush.msra.mxu0 0.0
        %1567 = vmatpush.msra.mxu0 0.0
        %1568 = vmatpush.msra.mxu0 0.0
        %1569 = vmatpush.msra.mxu0 0.0
        %1570 = vmatpush.msra.mxu0 0.0
        %1571 = vmatpush.msra.mxu0 0.0
        %1572 = vmatpush.msra.mxu0 0.0
        %1573 = vmatpush.msra.mxu0 0.0
        %v1574 = vand.u32 %v356, 4294901760
        %1575 = vmatpush.msra.mxu0 %v1574
        %v1576 = vand.u32 %v355, 4294901760
        %1577 = vmatpush.msra.mxu0 %v1576
        %v1578 = vand.u32 %v354, 4294901760
        %1579 = vmatpush.msra.mxu0 %v1578
        %v1580 = vand.u32 %v353, 4294901760
        %1581 = vmatpush.msra.mxu0 %v1580
        %v1582 = vand.u32 %v1560, 4294901760
        %v1583 = vsub.f32 %v1560, %v1582
        %v1584 = vand.u32 %v1583, 4294901760
        %v1585 = vsub.f32 %v1583, %v1584
        %v1586 = vand.u32 %v1585, 4294901760
        %1587 = vmatmul.f32.gmra.mxu0 %v1586
        %v1588 = vpop.f32.mrf.mxu0
        %v1589 = vadd.f32 0.0, %v1588
        %1590 = vdwg.mxu0
        %1591 = vmatpush.msra.mxu0 0.0
        %1592 = vmatpush.msra.mxu0 0.0
        %1593 = vmatpush.msra.mxu0 0.0
        %1594 = vmatpush.msra.mxu0 0.0
        %1595 = vmatpush.msra.mxu0 0.0
        %1596 = vmatpush.msra.mxu0 0.0
        %1597 = vmatpush.msra.mxu0 0.0
        %1598 = vmatpush.msra.mxu0 0.0
        %1599 = vmatpush.msra.mxu0 0.0
        %1600 = vmatpush.msra.mxu0 0.0
        %1601 = vmatpush.msra.mxu0 0.0
        %1602 = vmatpush.msra.mxu0 0.0
        %v1603 = vand.u32 %v356, 4294901760
        %v1604 = vsub.f32 %v356, %v1603
        %v1605 = vand.u32 %v1604, 4294901760
        %v1606 = vsub.f32 %v1604, %v1605
        %v1607 = vand.u32 %v1606, 4294901760
        %1608 = vmatpush.msra.mxu0 %v1607
        %v1609 = vand.u32 %v355, 4294901760
        %v1610 = vsub.f32 %v355, %v1609
        %v1611 = vand.u32 %v1610, 4294901760
        %v1612 = vsub.f32 %v1610, %v1611
        %v1613 = vand.u32 %v1612, 4294901760
        %1614 = vmatpush.msra.mxu0 %v1613
        %v1615 = vand.u32 %v354, 4294901760
        %v1616 = vsub.f32 %v354, %v1615
        %v1617 = vand.u32 %v1616, 4294901760
        %v1618 = vsub.f32 %v1616, %v1617
        %v1619 = vand.u32 %v1618, 4294901760
        %1620 = vmatpush.msra.mxu0 %v1619
        %v1621 = vand.u32 %v353, 4294901760
        %v1622 = vsub.f32 %v353, %v1621
        %v1623 = vand.u32 %v1622, 4294901760
        %v1624 = vsub.f32 %v1622, %v1623
        %v1625 = vand.u32 %v1624, 4294901760
        %1626 = vmatpush.msra.mxu0 %v1625
        %v1627 = vand.u32 %v1560, 4294901760
        %1628 = vmatmul.f32.gmra.mxu0 %v1627
        %v1629 = vpop.f32.mrf.mxu0
        %v1630 = vadd.f32 %v1589, %v1629
        %1631 = vdwg.mxu0
        %1632 = vmatpush.msra.mxu0 0.0
        %1633 = vmatpush.msra.mxu0 0.0
        %1634 = vmatpush.msra.mxu0 0.0
        %1635 = vmatpush.msra.mxu0 0.0
        %1636 = vmatpush.msra.mxu0 0.0
        %1637 = vmatpush.msra.mxu0 0.0
        %1638 = vmatpush.msra.mxu0 0.0
        %1639 = vmatpush.msra.mxu0 0.0
        %1640 = vmatpush.msra.mxu0 0.0
        %1641 = vmatpush.msra.mxu0 0.0
        %1642 = vmatpush.msra.mxu0 0.0
        %1643 = vmatpush.msra.mxu0 0.0
        %v1644 = vand.u32 %v356, 4294901760
        %v1645 = vsub.f32 %v356, %v1644
        %1646 = vmatpush.msra.mxu0 %v1645
        %v1647 = vand.u32 %v355, 4294901760
        %v1648 = vsub.f32 %v355, %v1647
        %1649 = vmatpush.msra.mxu0 %v1648
        %v1650 = vand.u32 %v354, 4294901760
        %v1651 = vsub.f32 %v354, %v1650
        %1652 = vmatpush.msra.mxu0 %v1651
        %v1653 = vand.u32 %v353, 4294901760
        %v1654 = vsub.f32 %v353, %v1653
        %1655 = vmatpush.msra.mxu0 %v1654
        %v1656 = vand.u32 %v1560, 4294901760
        %v1657 = vsub.f32 %v1560, %v1656
        %1658 = vmatmul.f32.gmra.mxu0 %v1657
        %v1659 = vpop.f32.mrf.mxu0
        %v1660 = vadd.f32 %v1630, %v1659
        %1661 = vdwg.mxu0
        %1662 = vmatpush.msra.mxu0 0.0
        %1663 = vmatpush.msra.mxu0 0.0
        %1664 = vmatpush.msra.mxu0 0.0
        %1665 = vmatpush.msra.mxu0 0.0
        %1666 = vmatpush.msra.mxu0 0.0
        %1667 = vmatpush.msra.mxu0 0.0
        %1668 = vmatpush.msra.mxu0 0.0
        %1669 = vmatpush.msra.mxu0 0.0
        %1670 = vmatpush.msra.mxu0 0.0
        %1671 = vmatpush.msra.mxu0 0.0
        %1672 = vmatpush.msra.mxu0 0.0
        %1673 = vmatpush.msra.mxu0 0.0
        %v1674 = vand.u32 %v356, 4294901760
        %1675 = vmatpush.msra.mxu0 %v1674
        %v1676 = vand.u32 %v355, 4294901760
        %1677 = vmatpush.msra.mxu0 %v1676
        %v1678 = vand.u32 %v354, 4294901760
        %1679 = vmatpush.msra.mxu0 %v1678
        %v1680 = vand.u32 %v353, 4294901760
        %1681 = vmatpush.msra.mxu0 %v1680
        %v1682 = vand.u32 %v1560, 4294901760
        %v1683 = vsub.f32 %v1560, %v1682
        %v1684 = vand.u32 %v1683, 4294901760
        %1685 = vmatmul.f32.gmra.mxu0 %v1684
        %v1686 = vpop.f32.mrf.mxu0
        %v1687 = vadd.f32 %v1660, %v1686
        %1688 = vdwg.mxu0
        %1689 = vmatpush.msra.mxu0 0.0
        %1690 = vmatpush.msra.mxu0 0.0
        %1691 = vmatpush.msra.mxu0 0.0
        %1692 = vmatpush.msra.mxu0 0.0
        %1693 = vmatpush.msra.mxu0 0.0
        %1694 = vmatpush.msra.mxu0 0.0
        %1695 = vmatpush.msra.mxu0 0.0
        %1696 = vmatpush.msra.mxu0 0.0
        %1697 = vmatpush.msra.mxu0 0.0
        %1698 = vmatpush.msra.mxu0 0.0
        %1699 = vmatpush.msra.mxu0 0.0
        %1700 = vmatpush.msra.mxu0 0.0
        %v1701 = vand.u32 %v356, 4294901760
        %v1702 = vsub.f32 %v356, %v1701
        %v1703 = vand.u32 %v1702, 4294901760
        %1704 = vmatpush.msra.mxu0 %v1703
        %v1705 = vand.u32 %v355, 4294901760
        %v1706 = vsub.f32 %v355, %v1705
        %v1707 = vand.u32 %v1706, 4294901760
        %1708 = vmatpush.msra.mxu0 %v1707
        %v1709 = vand.u32 %v354, 4294901760
        %v1710 = vsub.f32 %v354, %v1709
        %v1711 = vand.u32 %v1710, 4294901760
        %1712 = vmatpush.msra.mxu0 %v1711
        %v1713 = vand.u32 %v353, 4294901760
        %v1714 = vsub.f32 %v353, %v1713
        %v1715 = vand.u32 %v1714, 4294901760
        %1716 = vmatpush.msra.mxu0 %v1715
        %v1717 = vand.u32 %v1560, 4294901760
        %1718 = vmatmul.f32.gmra.mxu0 %v1717
        %v1719 = vpop.f32.mrf.mxu0
        %v1720 = vadd.f32 %v1687, %v1719
        %1721 = vdwg.mxu0
        %1722 = vmatpush.msra.mxu0 0.0
        %1723 = vmatpush.msra.mxu0 0.0
        %1724 = vmatpush.msra.mxu0 0.0
        %1725 = vmatpush.msra.mxu0 0.0
        %1726 = vmatpush.msra.mxu0 0.0
        %1727 = vmatpush.msra.mxu0 0.0
        %1728 = vmatpush.msra.mxu0 0.0
        %1729 = vmatpush.msra.mxu0 0.0
        %1730 = vmatpush.msra.mxu0 0.0
        %1731 = vmatpush.msra.mxu0 0.0
        %1732 = vmatpush.msra.mxu0 0.0
        %1733 = vmatpush.msra.mxu0 0.0
        %v1734 = vand.u32 %v356, 4294901760
        %1735 = vmatpush.msra.mxu0 %v1734
        %v1736 = vand.u32 %v355, 4294901760
        %1737 = vmatpush.msra.mxu0 %v1736
        %v1738 = vand.u32 %v354, 4294901760
        %1739 = vmatpush.msra.mxu0 %v1738
        %v1740 = vand.u32 %v353, 4294901760
        %1741 = vmatpush.msra.mxu0 %v1740
        %v1742 = vand.u32 %v1560, 4294901760
        %1743 = vmatmul.f32.gmra.mxu0 %v1742
        %v1744 = vpop.f32.mrf.mxu0
        %v1745 = vadd.f32 %v1720, %v1744
        %1746 = vdwg.mxu0
        %s1747 = scalar_lea.vmem %s317, %s320 [#allocation8]
        %1748 = vst.msk [vmem:[%s1747] sm:$0x3] %vm628, %v1745
        %s1749 = sand.u32 %s147, 1
        %s1750 = scalar_lea.sflag [#allocation4], %s1749
        %s1751 = sand.u32 %s147, 1
        %s1752 = smul.addr %s1751, 2
        %s1753 = scalar_lea.vmem [#allocation7], %s1752
        %s1754 = sand.u32 %s173, 1
        %s1755 = scalar_lea.sflag [#allocation9], %s1754
        %s1756 = sand.u32 %s173, 1
        %s1757 = smul.addr %s1756, 2
        %s1758 = scalar_lea.vmem [#allocation8], %s1757
        // Predicated region
        $region45: #{tpu_custom_call.1} parent=35 // pred_check
          %p1759 = pneg %p157
        $region46: #{tpu_custom_call.1} parent=35 // pred_check_branch
          %1761 = sbr.rel (%p1759) target = $region48
        $region47: #{tpu_custom_call.1} parent=35 // pred_region
          %1763 = vsyncadd %s1750, 0
          %s1764 = smul.addr %s33, 2
          %s1765 = scalar_lea.hbm %s4, %s1764
          %s1767 = sshll.u32 %s1753, 4
          %s1768 = int_to_ptr.vmem [resolvable:$true] %s1767
          %s1769 = sshll.u32 %s1765, 4
          %s1770 = int_to_ptr.hbm [resolvable:$true] %s1769
          %1772 = dma.vmem_to_hbm [thread:$0]  %s1768, 32, %s1770, %s1750
        $region48: #{tpu_custom_call.1} parent=35 // pred_fallthru
          _
        // Predicated region
        $region49: #{tpu_custom_call.1} parent=35 // pred_check
          %p1773 = pneg %p183
        $region50: #{tpu_custom_call.1} parent=35 // pred_check_branch
          %1775 = sbr.rel (%p1773) target = $region52
        $region51: #{tpu_custom_call.1} parent=35 // pred_region
          %1777 = vsyncadd %s1755, 0
          %s1778 = smul.addr %s33, 2
          %s1779 = scalar_lea.hbm %s5, %s1778
          %s1781 = sshll.u32 %s1758, 4
          %s1782 = int_to_ptr.vmem [resolvable:$true] %s1781
          %s1783 = sshll.u32 %s1779, 4
          %s1784 = int_to_ptr.hbm [resolvable:$true] %s1783
          %1786 = dma.vmem_to_hbm [thread:$0]  %s1782, 32, %s1784, %s1755
        $region52: #{tpu_custom_call.1} parent=35 // pred_fallthru
          _
      $region36: #{tpu_custom_call.1} parent=5 // pred_fallthru
        _
      %p1787 = scmp.le.s32.totalorder 2, %s24
      // Predicated region
      $region53: #{tpu_custom_call.1} parent=5 // pred_check
        %p1788 = pneg %p1787
      $region54: #{tpu_custom_call.1} parent=5 // pred_check_branch
        %1790 = sbr.rel (%p1788) target = $region56
      $region55: #{tpu_custom_call.1} parent=5 // pred_region
        %s1791 = ssub.s32 %s24, 2
        // Predicated region
        $region57: #{tpu_custom_call.1} parent=55 // pred_check
          %p1792 = pneg %p163
        $region58: #{tpu_custom_call.1} parent=55 // pred_check_branch
          %1794 = sbr.rel (%p1792) target = $region60
        $region59: #{tpu_custom_call.1} parent=55 // pred_region
          %s1795 = sand.u32 %s148, 1
          %s1796 = scalar_lea.sflag [#allocation4], %s1795
          %s1797 = sand.u32 %s148, 1
          %s1798 = smul.addr %s1797, 2
          %s1799 = scalar_lea.vmem [#allocation7], %s1798
          %1801 = dma.done %s1796, 32
        $region60: #{tpu_custom_call.1} parent=55 // pred_fallthru
          _
        // Predicated region
        $region61: #{tpu_custom_call.1} parent=55 // pred_check
          %p1802 = pneg %p189
        $region62: #{tpu_custom_call.1} parent=55 // pred_check_branch
          %1804 = sbr.rel (%p1802) target = $region64
        $region63: #{tpu_custom_call.1} parent=55 // pred_region
          %s1805 = sand.u32 %s174, 1
          %s1806 = scalar_lea.sflag [#allocation9], %s1805
          %s1807 = sand.u32 %s174, 1
          %s1808 = smul.addr %s1807, 2
          %s1809 = scalar_lea.vmem [#allocation8], %s1808
          %1811 = dma.done %s1806, 32
        $region64: #{tpu_custom_call.1} parent=55 // pred_fallthru
          _
      $region56: #{tpu_custom_call.1} parent=5 // pred_fallthru
        _
    $region6: #{tpu_custom_call.1} parent=1 // loop_footer
      %s28 = sadd.s32 1, %s24
    $region7: #{tpu_custom_call.1} parent=1 // loop_footer_branch
      %23 = sbr.rel target = $region3
    $region8: #{tpu_custom_call.1} parent=1 // loop_exit
      _
    %1812 = vsyncpa [#allocation3], 1
    %s1813 = scalar_lea.sflag [#allocation3], 1
    %1814 = vsyncpa %s1813, 1
    %1815 = vsyncpa [#allocation6], 1
    %s1816 = scalar_lea.sflag [#allocation6], 1
    %1817 = vsyncpa %s1816, 1
    %1818 = vsyncpa [#allocation4], 1
    %s1819 = scalar_lea.sflag [#allocation4], 1
    %1820 = vsyncpa %s1819, 1
    %1821 = vsyncpa [#allocation9], 1
    %s1822 = scalar_lea.sflag [#allocation9], 1
    %1823 = vsyncpa %s1822, 1

</llo_original>
